<compile_context>
chip_gen: v5e
topology: v5e:2x2
jax: 0.10.0
libtpu: 0.0.40
codegen_flags: <defaults>
</compile_context>

<pallas_src>
import functools

import jax
import jax.numpy as jnp
from jax.experimental import pallas as pl
from jax.experimental.pallas import tpu as pltpu

CONV_OUT_CH = 4
KERNEL_SIZE = 4
IN_LEN = 784                              # flattened input length implied by Linear(3124, 10)
CONV_LEN = IN_LEN - KERNEL_SIZE + 1       # 781
NUM_CLASSES = 10

PAD_LEN = 896                             # per-channel K padded to 7*128 (lane aligned)
X_PAD = PAD_LEN                           # x tile width == per-channel chunk width (roll trick)
K_FUSED = CONV_OUT_CH * PAD_LEN           # 3584
N_PAD = 128                               # lane-dense output width

# Overhang / roll-wraparound guard: every conv position t in [CONV_LEN, PAD_LEN)
# (including the <= KERNEL_SIZE-1 wrapped lanes at t >= X_PAD-(KERNEL_SIZE-1))
# must hit an all-zero row of the fused linear weight built in the wrapper.
assert X_PAD == PAD_LEN
assert PAD_LEN % 128 == 0 and PAD_LEN >= IN_LEN
assert X_PAD - (KERNEL_SIZE - 1) >= CONV_LEN


def _round_up(n, m):
    return ((n + m - 1) // m) * m


def _kernel_config():
    """Returns (conv_in_bf16, tile_b_max, vmem_limit_bytes), gated on TPU generation."""
    try:
        kind = jax.devices()[0].device_kind.lower()
    except Exception:
        kind = ""
    is_v5e = ("v5e" in kind) or ("v5" in kind and "lite" in kind)
    is_v6 = "v6" in kind
    is_v7 = ("v7" in kind) or ("7x" in kind)
    conv_in_bf16 = is_v6 or is_v7                      # bf16 VALU only on v6e / v7x
    if is_v5e or is_v6:                                # 128 MiB physical VMEM
        return conv_in_bf16, 512, 64 * 1024 * 1024
    # v7x (64 MiB VMEM/TC, keep >=2 grid steps for both TCs) and unknown chips.
    return conv_in_bf16, 256, 32 * 1024 * 1024


def _conv1dnn_kernel(x_ref, cw_ref, cb_ref, lw_ref, lb_ref, o_ref, *, conv_in_bf16):
    # x_ref : (TILE_B, 896)   bf16 VMEM  batch tile (pipelined over the grid)
    # cw_ref: (4, 4)          f32  SMEM  conv weight [out_ch, tap]
    # cb_ref: (1, 4)          f32  SMEM  conv bias
    # lw_ref: (3584, 128)     bf16 VMEM  fused / zero-padded linear weight (resident)
    # lb_ref: (1, 128)        f32  VMEM  zero-padded linear bias
    # o_ref : (TILE_B, 128)   f32  VMEM
    cd = jnp.bfloat16 if conv_in_bf16 else jnp.float32

    x = x_ref[...]                                   # bf16 (TILE_B, 896)
    xf = x.astype(jnp.float32)

    # Shifted windows win[k][b, t] = x[b, (t + k) mod 896] via XLU lane rotation.
    # Rolls are done in f32 (portable across generations); windows are kept in
    # the conv compute dtype.  Wrapped lanes only affect t >= 893 >= 781, where
    # the matching rows of lw are zero.
    win = [x if conv_in_bf16 else xf]
    for k in range(1, KERNEL_SIZE):
        win.append(pltpu.roll(xf, shift=X_PAD - k, axis=1).astype(cd))

    out = None
    for c in range(CONV_OUT_CH):
        # Conv1d (single input channel) as a scalar-weighted MAC chain on the VPU.
        acc = win[0] * cw_ref[c, 0].astype(cd)
        for k in range(1, KERNEL_SIZE):
            acc = acc + win[k] * cw_ref[c, k].astype(cd)
        acc = jnp.maximum(acc + cb_ref[0, c].astype(cd), 0.0)       # bias + ReLU
        # Positions t in [781, 896) are overhang; the matching lw rows are zero.
        chunk = acc.astype(jnp.bfloat16)
        # Accumulating per-channel MXU dot against a static 896-aligned row slice
        # of the resident weight (no fused-activation concat is materialized).
        d = jnp.dot(chunk, lw_ref[c * PAD_LEN:(c + 1) * PAD_LEN, :],
                    preferred_element_type=jnp.float32)
        out = d if out is None else out + d

    o_ref[...] = out + lb_ref[...]


@jax.jit
def conv1dnn_forward(x, conv_w, conv_b, lin_w, lin_b):
    """x: (B, 28, 28) or (B, 784); returns (B, 10) f32."""
    B = x.shape[0]
    x2 = x.reshape(B, -1)
    assert x2.shape[1] == IN_LEN, f"expected flattened length {IN_LEN}, got {x2.shape[1]}"

    conv_in_bf16, tile_b_max, vmem_limit = _kernel_config()

    tile_b = min(tile_b_max, _round_up(B, 8))        # multiple of 8 sublanes
    Bp = _round_up(B, tile_b)
    grid = Bp // tile_b

    # bf16 input DMA; batch pad (-> grid multiple) and lane pad (784 -> 896, zeros)
    # are fused with the cast into a single wrapper-side op.
    x2 = jnp.pad(x2.astype(jnp.bfloat16), ((0, Bp - B), (0, X_PAD - IN_LEN)))

    cw2 = conv_w.reshape(CONV_OUT_CH, KERNEL_SIZE).astype(jnp.float32)   # (4, 4)
    cb2 = conv_b.reshape(1, CONV_OUT_CH).astype(jnp.float32)             # (1, 4)

    # PyTorch Linear: y = flat @ W.T + b with flat idx = c*781 + t.
    # Fused / padded weight (4, 896, 128): exactly zero outside [:, :781, :10]
    # (this zero-fill is what makes the overhang / roll-wrap positions harmless).
    lw3 = jnp.transpose(lin_w.astype(jnp.float32)).reshape(
        CONV_OUT_CH, CONV_LEN, NUM_CLASSES)                              # (4, 781, 10)
    lw_pad = jnp.zeros((CONV_OUT_CH, PAD_LEN, N_PAD), jnp.float32)
    lw_pad = lw_pad.at[:, :CONV_LEN, :NUM_CLASSES].set(lw3)
    lw_fused = lw_pad.reshape(K_FUSED, N_PAD).astype(jnp.bfloat16)       # (3584, 128)

    lb2 = jnp.zeros((1, N_PAD), jnp.float32).at[0, :NUM_CLASSES].set(
        lin_b.astype(jnp.float32))                                        # (1, 128)

    cost = pl.CostEstimate(
        flops=int(Bp * (2 * CONV_OUT_CH * KERNEL_SIZE * CONV_LEN
                        + 2 * K_FUSED * N_PAD)),
        transcendentals=0,
        bytes_accessed=int(Bp * X_PAD * 2 + K_FUSED * N_PAD * 2 + Bp * N_PAD * 4),
    )

    kernel = functools.partial(_conv1dnn_kernel, conv_in_bf16=conv_in_bf16)

    out = pl.pallas_call(
        kernel,
        out_shape=jax.ShapeDtypeStruct((Bp, N_PAD), jnp.float32),
        grid=(grid,),
        in_specs=[
            pl.BlockSpec((tile_b, X_PAD), lambda i: (i, 0)),          # x (pipelined)
            pl.BlockSpec(memory_space=pltpu.MemorySpace.SMEM),        # conv weight
            pl.BlockSpec(memory_space=pltpu.MemorySpace.SMEM),        # conv bias
            # Resident fused linear weight: constant index map -> DMA'd once.
            # (Left at default buffering for portability; single-buffering would
            #  reclaim ~0.9 MiB on v7x.)
            pl.BlockSpec((K_FUSED, N_PAD), lambda i: (0, 0)),
            pl.BlockSpec((1, N_PAD), lambda i: (0, 0)),               # linear bias
        ],
        out_specs=pl.BlockSpec((tile_b, N_PAD), lambda i: (i, 0)),
        compiler_params=pltpu.CompilerParams(
            dimension_semantics=("parallel",),     # shard batch tiles across TCs
            vmem_limit_bytes=vmem_limit,
        ),
        cost_estimate=cost,
    )(x2, cw2, cb2, lw_fused, lb2)

    return out[:B, :NUM_CLASSES]


def _reference_forward(x, conv_w, conv_b, lin_w, lin_b):
    """Plain-JAX f32 reference matching PyTorch semantics exactly."""
    B = x.shape[0]
    xf = x.reshape(B, IN_LEN).astype(jnp.float32)
    chans = []
    for c in range(CONV_OUT_CH):
        s = jnp.zeros((B, CONV_LEN), jnp.float32)
        for k in range(KERNEL_SIZE):
            s = s + conv_w[c, 0, k] * xf[:, k:k + CONV_LEN]
        chans.append(s + conv_b[c])
    conv = jnp.maximum(jnp.stack(chans, axis=1), 0.0)   # (B, 4, 781)
    flat = conv.reshape(B, CONV_OUT_CH * CONV_LEN)       # channel-major flatten
    return flat @ lin_w.T + lin_b


if __name__ == "__main__":
    key = jax.random.PRNGKey(0)
    k1, k2, k3, k4, k5 = jax.random.split(key, 5)

    # Deterministic synthetic parameters (shapes from Conv1DNN.__init__).
    conv_w = jax.random.normal(k1, (CONV_OUT_CH, 1, KERNEL_SIZE), jnp.float32) * 0.5
    conv_b = jax.random.normal(k2, (CONV_OUT_CH,), jnp.float32) * 0.1
    lin_w = jax.random.normal(k3, (NUM_CLASSES, CONV_OUT_CH * CONV_LEN), jnp.float32) * 0.02
    lin_b = jax.random.normal(k4, (NUM_CLASSES,), jnp.float32) * 0.1

    # Small input: batch=2 MNIST-like images (28*28 = 784, required by Linear(3124, 10)).
    x = jax.random.normal(k5, (2, 28, 28), jnp.float32)

    out = jax.block_until_ready(conv1dnn_forward(x, conv_w, conv_b, lin_w, lin_b))
    ref = _reference_forward(x, conv_w, conv_b, lin_w, lin_b)

    assert out.shape == (2, NUM_CLASSES), out.shape
    # Input DMA + matmul (and on v6e/v7x the conv MAC chain) run in bf16 with f32
    # accumulation, so compare against the f32 reference with a bf16 tolerance.
    assert jnp.allclose(out, ref, rtol=3e-2, atol=3e-2), (
        "Pallas kernel output mismatch vs reference")

    print("KERNEL_OK")
</pallas_src>

<mosaic_0001>
module attributes {stable_mosaic.version = 11 : i64} {
  func.func @_conv1dnn_kernel(%arg0: i32, %arg1: memref<8x896xbf16, #tpu.memory_space<vmem>>, %arg2: memref<4x4xf32, #tpu.memory_space<smem>>, %arg3: memref<1x4xf32, #tpu.memory_space<smem>>, %arg4: memref<3584x128xbf16, #tpu.memory_space<vmem>>, %arg5: memref<1x128xf32, #tpu.memory_space<vmem>>, %arg6: memref<8x128xf32, #tpu.memory_space<vmem>>) attributes {dimension_semantics = [#tpu.dimension_semantics<parallel>], iteration_bounds = array<i64: 1>, scalar_prefetch = 0 : i64, scratch_operands = 0 : i64, tpu.core_type = #tpu.core_type<tc>, window_params = [{transform_indices = @transform_0, window_bounds = array<i64: 8, 896>}, {transform_indices = @transform_1, window_bounds = array<i64: 4, 4>}, {transform_indices = @transform_2, window_bounds = array<i64: 1, 4>}, {pipeline_mode = #tpu.pipeline_mode<synchronous>, transform_indices = @transform_3, window_bounds = array<i64: 3584, 128>}, {pipeline_mode = #tpu.pipeline_mode<synchronous>, transform_indices = @transform_4, window_bounds = array<i64: 1, 128>}, {transform_indices = @transform_5, window_bounds = array<i64: 8, 128>}]} {
    %c0 = arith.constant 0 : index
    %c0_0 = arith.constant 0 : index
    %0 = vector.load %arg1[%c0, %c0_0] : memref<8x896xbf16, #tpu.memory_space<vmem>>, vector<8x896xbf16>
    %1 = arith.extf %0 : vector<8x896xbf16> to vector<8x896xf32>
    %c895_i32 = arith.constant 895 : i32
    %2 = tpu.dynamic_rotate %1 by %c895_i32 dim 1 : vector<8x896xf32>, i32 -> vector<8x896xf32>
    %c894_i32 = arith.constant 894 : i32
    %3 = tpu.dynamic_rotate %1 by %c894_i32 dim 1 : vector<8x896xf32>, i32 -> vector<8x896xf32>
    %c893_i32 = arith.constant 893 : i32
    %4 = tpu.dynamic_rotate %1 by %c893_i32 dim 1 : vector<8x896xf32>, i32 -> vector<8x896xf32>
    %c0_1 = arith.constant 0 : index
    %c0_2 = arith.constant 0 : index
    %5 = memref.load %arg2[%c0_1, %c0_2] : memref<4x4xf32, #tpu.memory_space<smem>>
    %6 = vector.broadcast %5 : f32 to vector<8x896xf32>
    %7 = arith.mulf %1, %6 : vector<8x896xf32>
    %c0_3 = arith.constant 0 : index
    %c1 = arith.constant 1 : index
    %8 = memref.load %arg2[%c0_3, %c1] : memref<4x4xf32, #tpu.memory_space<smem>>
    %9 = vector.broadcast %8 : f32 to vector<8x896xf32>
    %10 = arith.mulf %2, %9 : vector<8x896xf32>
    %11 = arith.addf %7, %10 : vector<8x896xf32>
    %c0_4 = arith.constant 0 : index
    %c2 = arith.constant 2 : index
    %12 = memref.load %arg2[%c0_4, %c2] : memref<4x4xf32, #tpu.memory_space<smem>>
    %13 = vector.broadcast %12 : f32 to vector<8x896xf32>
    %14 = arith.mulf %3, %13 : vector<8x896xf32>
    %15 = arith.addf %11, %14 : vector<8x896xf32>
    %c0_5 = arith.constant 0 : index
    %c3 = arith.constant 3 : index
    %16 = memref.load %arg2[%c0_5, %c3] : memref<4x4xf32, #tpu.memory_space<smem>>
    %17 = vector.broadcast %16 : f32 to vector<8x896xf32>
    %18 = arith.mulf %4, %17 : vector<8x896xf32>
    %19 = arith.addf %15, %18 : vector<8x896xf32>
    %c0_6 = arith.constant 0 : index
    %c0_7 = arith.constant 0 : index
    %20 = memref.load %arg3[%c0_6, %c0_7] : memref<1x4xf32, #tpu.memory_space<smem>>
    %21 = vector.broadcast %20 : f32 to vector<8x896xf32>
    %22 = arith.addf %19, %21 : vector<8x896xf32>
    %cst = arith.constant 0.000000e+00 : f32
    %23 = vector.broadcast %cst : f32 to vector<8x896xf32>
    %24 = arith.maximumf %22, %23 : vector<8x896xf32>
    %25 = arith.truncf %24 : vector<8x896xf32> to vector<8x896xbf16>
    %c0_8 = arith.constant 0 : index
    %c0_9 = arith.constant 0 : index
    %26 = vector.load %arg4[%c0_8, %c0_9] : memref<3584x128xbf16, #tpu.memory_space<vmem>>, vector<896x128xbf16>
    %cst_10 = arith.constant dense<0.000000e+00> : vector<8x128xf32>
    %27 = tpu.matmul %25, %26, %cst_10 {dimension_numbers = #tpu.dot_dimension_numbers<[1], [0], [0], [1], [0, 0, 1, 1], [], []>} : vector<8x896xbf16>, vector<896x128xbf16>, vector<8x128xf32> -> vector<8x128xf32>
    %c1_11 = arith.constant 1 : index
    %c0_12 = arith.constant 0 : index
    %28 = memref.load %arg2[%c1_11, %c0_12] : memref<4x4xf32, #tpu.memory_space<smem>>
    %29 = vector.broadcast %28 : f32 to vector<8x896xf32>
    %30 = arith.mulf %1, %29 : vector<8x896xf32>
    %c1_13 = arith.constant 1 : index
    %c1_14 = arith.constant 1 : index
    %31 = memref.load %arg2[%c1_13, %c1_14] : memref<4x4xf32, #tpu.memory_space<smem>>
    %32 = vector.broadcast %31 : f32 to vector<8x896xf32>
    %33 = arith.mulf %2, %32 : vector<8x896xf32>
    %34 = arith.addf %30, %33 : vector<8x896xf32>
    %c1_15 = arith.constant 1 : index
    %c2_16 = arith.constant 2 : index
    %35 = memref.load %arg2[%c1_15, %c2_16] : memref<4x4xf32, #tpu.memory_space<smem>>
    %36 = vector.broadcast %35 : f32 to vector<8x896xf32>
    %37 = arith.mulf %3, %36 : vector<8x896xf32>
    %38 = arith.addf %34, %37 : vector<8x896xf32>
    %c1_17 = arith.constant 1 : index
    %c3_18 = arith.constant 3 : index
    %39 = memref.load %arg2[%c1_17, %c3_18] : memref<4x4xf32, #tpu.memory_space<smem>>
    %40 = vector.broadcast %39 : f32 to vector<8x896xf32>
    %41 = arith.mulf %4, %40 : vector<8x896xf32>
    %42 = arith.addf %38, %41 : vector<8x896xf32>
    %c0_19 = arith.constant 0 : index
    %c1_20 = arith.constant 1 : index
    %43 = memref.load %arg3[%c0_19, %c1_20] : memref<1x4xf32, #tpu.memory_space<smem>>
    %44 = vector.broadcast %43 : f32 to vector<8x896xf32>
    %45 = arith.addf %42, %44 : vector<8x896xf32>
    %cst_21 = arith.constant 0.000000e+00 : f32
    %46 = vector.broadcast %cst_21 : f32 to vector<8x896xf32>
    %47 = arith.maximumf %45, %46 : vector<8x896xf32>
    %48 = arith.truncf %47 : vector<8x896xf32> to vector<8x896xbf16>
    %c896 = arith.constant 896 : index
    %c0_22 = arith.constant 0 : index
    %49 = vector.load %arg4[%c896, %c0_22] : memref<3584x128xbf16, #tpu.memory_space<vmem>>, vector<896x128xbf16>
    %cst_23 = arith.constant dense<0.000000e+00> : vector<8x128xf32>
    %50 = tpu.matmul %48, %49, %cst_23 {dimension_numbers = #tpu.dot_dimension_numbers<[1], [0], [0], [1], [0, 0, 1, 1], [], []>} : vector<8x896xbf16>, vector<896x128xbf16>, vector<8x128xf32> -> vector<8x128xf32>
    %51 = arith.addf %27, %50 : vector<8x128xf32>
    %c2_24 = arith.constant 2 : index
    %c0_25 = arith.constant 0 : index
    %52 = memref.load %arg2[%c2_24, %c0_25] : memref<4x4xf32, #tpu.memory_space<smem>>
    %53 = vector.broadcast %52 : f32 to vector<8x896xf32>
    %54 = arith.mulf %1, %53 : vector<8x896xf32>
    %c2_26 = arith.constant 2 : index
    %c1_27 = arith.constant 1 : index
    %55 = memref.load %arg2[%c2_26, %c1_27] : memref<4x4xf32, #tpu.memory_space<smem>>
    %56 = vector.broadcast %55 : f32 to vector<8x896xf32>
    %57 = arith.mulf %2, %56 : vector<8x896xf32>
    %58 = arith.addf %54, %57 : vector<8x896xf32>
    %c2_28 = arith.constant 2 : index
    %c2_29 = arith.constant 2 : index
    %59 = memref.load %arg2[%c2_28, %c2_29] : memref<4x4xf32, #tpu.memory_space<smem>>
    %60 = vector.broadcast %59 : f32 to vector<8x896xf32>
    %61 = arith.mulf %3, %60 : vector<8x896xf32>
    %62 = arith.addf %58, %61 : vector<8x896xf32>
    %c2_30 = arith.constant 2 : index
    %c3_31 = arith.constant 3 : index
    %63 = memref.load %arg2[%c2_30, %c3_31] : memref<4x4xf32, #tpu.memory_space<smem>>
    %64 = vector.broadcast %63 : f32 to vector<8x896xf32>
    %65 = arith.mulf %4, %64 : vector<8x896xf32>
    %66 = arith.addf %62, %65 : vector<8x896xf32>
    %c0_32 = arith.constant 0 : index
    %c2_33 = arith.constant 2 : index
    %67 = memref.load %arg3[%c0_32, %c2_33] : memref<1x4xf32, #tpu.memory_space<smem>>
    %68 = vector.broadcast %67 : f32 to vector<8x896xf32>
    %69 = arith.addf %66, %68 : vector<8x896xf32>
    %cst_34 = arith.constant 0.000000e+00 : f32
    %70 = vector.broadcast %cst_34 : f32 to vector<8x896xf32>
    %71 = arith.maximumf %69, %70 : vector<8x896xf32>
    %72 = arith.truncf %71 : vector<8x896xf32> to vector<8x896xbf16>
    %c1792 = arith.constant 1792 : index
    %c0_35 = arith.constant 0 : index
    %73 = vector.load %arg4[%c1792, %c0_35] : memref<3584x128xbf16, #tpu.memory_space<vmem>>, vector<896x128xbf16>
    %cst_36 = arith.constant dense<0.000000e+00> : vector<8x128xf32>
    %74 = tpu.matmul %72, %73, %cst_36 {dimension_numbers = #tpu.dot_dimension_numbers<[1], [0], [0], [1], [0, 0, 1, 1], [], []>} : vector<8x896xbf16>, vector<896x128xbf16>, vector<8x128xf32> -> vector<8x128xf32>
    %75 = arith.addf %51, %74 : vector<8x128xf32>
    %c3_37 = arith.constant 3 : index
    %c0_38 = arith.constant 0 : index
    %76 = memref.load %arg2[%c3_37, %c0_38] : memref<4x4xf32, #tpu.memory_space<smem>>
    %77 = vector.broadcast %76 : f32 to vector<8x896xf32>
    %78 = arith.mulf %1, %77 : vector<8x896xf32>
    %c3_39 = arith.constant 3 : index
    %c1_40 = arith.constant 1 : index
    %79 = memref.load %arg2[%c3_39, %c1_40] : memref<4x4xf32, #tpu.memory_space<smem>>
    %80 = vector.broadcast %79 : f32 to vector<8x896xf32>
    %81 = arith.mulf %2, %80 : vector<8x896xf32>
    %82 = arith.addf %78, %81 : vector<8x896xf32>
    %c3_41 = arith.constant 3 : index
    %c2_42 = arith.constant 2 : index
    %83 = memref.load %arg2[%c3_41, %c2_42] : memref<4x4xf32, #tpu.memory_space<smem>>
    %84 = vector.broadcast %83 : f32 to vector<8x896xf32>
    %85 = arith.mulf %3, %84 : vector<8x896xf32>
    %86 = arith.addf %82, %85 : vector<8x896xf32>
    %c3_43 = arith.constant 3 : index
    %c3_44 = arith.constant 3 : index
    %87 = memref.load %arg2[%c3_43, %c3_44] : memref<4x4xf32, #tpu.memory_space<smem>>
    %88 = vector.broadcast %87 : f32 to vector<8x896xf32>
    %89 = arith.mulf %4, %88 : vector<8x896xf32>
    %90 = arith.addf %86, %89 : vector<8x896xf32>
    %c0_45 = arith.constant 0 : index
    %c3_46 = arith.constant 3 : index
    %91 = memref.load %arg3[%c0_45, %c3_46] : memref<1x4xf32, #tpu.memory_space<smem>>
    %92 = vector.broadcast %91 : f32 to vector<8x896xf32>
    %93 = arith.addf %90, %92 : vector<8x896xf32>
    %cst_47 = arith.constant 0.000000e+00 : f32
    %94 = vector.broadcast %cst_47 : f32 to vector<8x896xf32>
    %95 = arith.maximumf %93, %94 : vector<8x896xf32>
    %96 = arith.truncf %95 : vector<8x896xf32> to vector<8x896xbf16>
    %c2688 = arith.constant 2688 : index
    %c0_48 = arith.constant 0 : index
    %97 = vector.load %arg4[%c2688, %c0_48] : memref<3584x128xbf16, #tpu.memory_space<vmem>>, vector<896x128xbf16>
    %cst_49 = arith.constant dense<0.000000e+00> : vector<8x128xf32>
    %98 = tpu.matmul %96, %97, %cst_49 {dimension_numbers = #tpu.dot_dimension_numbers<[1], [0], [0], [1], [0, 0, 1, 1], [], []>} : vector<8x896xbf16>, vector<896x128xbf16>, vector<8x128xf32> -> vector<8x128xf32>
    %99 = arith.addf %75, %98 : vector<8x128xf32>
    %c0_50 = arith.constant 0 : index
    %c0_51 = arith.constant 0 : index
    %100 = vector.load %arg5[%c0_50, %c0_51] : memref<1x128xf32, #tpu.memory_space<vmem>>, vector<1x128xf32>
    %101 = vector.broadcast %100 : vector<1x128xf32> to vector<8x128xf32>
    %102 = arith.addf %99, %101 : vector<8x128xf32>
    %c0_52 = arith.constant 0 : index
    %c0_53 = arith.constant 0 : index
    %103 = vector.load %arg6[%c0_52, %c0_53] : memref<8x128xf32, #tpu.memory_space<vmem>>, vector<8x128xf32>
    tpu.vector_store %arg6[%c0_52, %c0_53], %102 {strides = array<i32>} : memref<8x128xf32, #tpu.memory_space<vmem>>, vector<8x128xf32>,
    return
  }
  func.func @transform_0(%arg0: i32) -> (i32, i32) {
    %c0_i32 = arith.constant 0 : i32
    %c0_i32_0 = arith.constant 0 : i32
    return %arg0, %c0_i32 : i32, i32
  }
  func.func @transform_1(%arg0: i32) -> (i32, i32) {
    %c0_i32 = arith.constant 0 : i32
    %c0_i32_0 = arith.constant 0 : i32
    %c0_i32_1 = arith.constant 0 : i32
    return %c0_i32, %c0_i32_0 : i32, i32
  }
  func.func @transform_2(%arg0: i32) -> (i32, i32) {
    %c0_i32 = arith.constant 0 : i32
    %c0_i32_0 = arith.constant 0 : i32
    %c0_i32_1 = arith.constant 0 : i32
    return %c0_i32, %c0_i32_0 : i32, i32
  }
  func.func @transform_3(%arg0: i32) -> (i32, i32) {
    %c0_i32 = arith.constant 0 : i32
    %c0_i32_0 = arith.constant 0 : i32
    %c0_i32_1 = arith.constant 0 : i32
    return %c0_i32, %c0_i32_0 : i32, i32
  }
  func.func @transform_4(%arg0: i32) -> (i32, i32) {
    %c0_i32 = arith.constant 0 : i32
    %c0_i32_0 = arith.constant 0 : i32
    %c0_i32_1 = arith.constant 0 : i32
    return %c0_i32, %c0_i32_0 : i32, i32
  }
  func.func @transform_5(%arg0: i32) -> (i32, i32) {
    %c0_i32 = arith.constant 0 : i32
    %c0_i32_0 = arith.constant 0 : i32
    return %arg0, %c0_i32 : i32, i32
  }
}

</mosaic_0001>

<llo_original>
// kernel: conv1dnn_forward.1
$region0: #{conv1dnn_forward.1}
  #allocation0 [shape = 'u32[]', space=smem, size = 0x4, offset = 0x4, fixed_abs, tag = 'smem constant byte address 0x4 - core index']
  #allocation1 [shape = 'u32[72,128]{1,0:T(1,128)}', space=vmem, size = 0x9000, scoped, tag = 'internal scratch']
  %s0 = inlined_call_operand.vmem [shape: bf16[8,896], index: 0, kind: input, shape index: {}]
  %s1 = inlined_call_operand.vmem [shape: f32[4,4], index: 1, kind: input, shape index: {}]
  %s2 = inlined_call_operand.vmem [shape: f32[1,4], index: 2, kind: input, shape index: {}]
  %s3 = inlined_call_operand.vmem [shape: bf16[3584,128], index: 3, kind: input, shape index: {}]
  %s4 = inlined_call_operand.vmem [shape: f32[1,128], index: 4, kind: input, shape index: {}]
  %s5 = inlined_call_operand.vmem [shape: f32[8,128], index: 5, kind: output, shape index: {}]
  %s6 = sld [smem:[#allocation0]]
  $region38: #{conv1dnn_forward.1} parent=0
    _
  %s8 = ssub.s32 1, %s6
  %s9 = scalar_select 0, %s8, %s6
  $region1: #{conv1dnn_forward.1} parent=0
    #allocation2 [shape = 'u8[2048]{0}', space=smem, size = 0x800, scoped, tag = 'input window, operand 1, single buffered']
    #allocation3 [shape = 's32[1]{0}', space=sflag, size = 0x4, scoped, tag = 'scoped memory for conv1dnn_forward.1']
    #allocation4 [shape = 'u8[512]{0}', space=smem, size = 0x200, scoped, tag = 'input window, operand 2, single buffered']
    #allocation5 [shape = 's32[1]{0}', space=sflag, size = 0x4, scoped, tag = 'scoped memory for conv1dnn_forward.1']
    %10 = vsyncpa [#allocation3], 0
    %11 = vsyncpa [#allocation5], 0
    // Predicated region
    $region2: #{conv1dnn_forward.1} parent=1 // pred_check
      _
    $region3: #{conv1dnn_forward.1} parent=1 // pred_check_branch
      %13 = sbr.rel (0) target = $region5
    $region4: #{conv1dnn_forward.1} parent=1 // pred_region
      _
    $region5: #{conv1dnn_forward.1} parent=1 // pred_fallthru
      _
    // Predicated region
    $region6: #{conv1dnn_forward.1} parent=1 // pred_check
      _
    $region7: #{conv1dnn_forward.1} parent=1 // pred_check_branch
      %15 = sbr.rel (0) target = $region9
    $region8: #{conv1dnn_forward.1} parent=1 // pred_region
      %17 = vsyncadd [#allocation3], 0
      %s19 = sshll.u32 %s1, 4
      %s20 = int_to_ptr.vmem [resolvable:$true] %s19
      %22 = dma.vmem_to_smem %s20, 64, [#allocation2], [#allocation3]
    $region9: #{conv1dnn_forward.1} parent=1 // pred_fallthru
      _
    // Predicated region
    $region10: #{conv1dnn_forward.1} parent=1 // pred_check
      _
    $region11: #{conv1dnn_forward.1} parent=1 // pred_check_branch
      %24 = sbr.rel (0) target = $region13
    $region12: #{conv1dnn_forward.1} parent=1 // pred_region
      %26 = vsyncadd [#allocation5], 0
      %s28 = sshll.u32 %s2, 4
      %s29 = int_to_ptr.vmem [resolvable:$true] %s28
      %31 = dma.vmem_to_smem %s29, 16, [#allocation4], [#allocation5]
    $region13: #{conv1dnn_forward.1} parent=1 // pred_fallthru
      _
    // Predicated region
    $region14: #{conv1dnn_forward.1} parent=1 // pred_check
      _
    $region15: #{conv1dnn_forward.1} parent=1 // pred_check_branch
      %33 = sbr.rel (0) target = $region17
    $region16: #{conv1dnn_forward.1} parent=1 // pred_region
      _
    $region17: #{conv1dnn_forward.1} parent=1 // pred_fallthru
      _
    // Predicated region
    $region18: #{conv1dnn_forward.1} parent=1 // pred_check
      _
    $region19: #{conv1dnn_forward.1} parent=1 // pred_check_branch
      %35 = sbr.rel (0) target = $region21
    $region20: #{conv1dnn_forward.1} parent=1 // pred_region
      _
    $region21: #{conv1dnn_forward.1} parent=1 // pred_fallthru
      _
    // Predicated region
    $region22: #{conv1dnn_forward.1} parent=1 // pred_check
      _
    $region23: #{conv1dnn_forward.1} parent=1 // pred_check_branch
      %37 = sbr.rel (0) target = $region25
    $region24: #{conv1dnn_forward.1} parent=1 // pred_region
      %39 = dma.done [#allocation3], 64
    $region25: #{conv1dnn_forward.1} parent=1 // pred_fallthru
      _
    // Predicated region
    $region26: #{conv1dnn_forward.1} parent=1 // pred_check
      _
    $region27: #{conv1dnn_forward.1} parent=1 // pred_check_branch
      %41 = sbr.rel (0) target = $region29
    $region28: #{conv1dnn_forward.1} parent=1 // pred_region
      %43 = dma.done [#allocation5], 16
    $region29: #{conv1dnn_forward.1} parent=1 // pred_fallthru
      _
    %44 = sfence
    %v45 = vld [vmem:[%s0] sm:$0xff]
    %v46 = vld [vmem:[%s0 + $0x8] sm:$0xff]
    %v47 = vld [vmem:[%s0 + $0x10] sm:$0xff]
    %v48 = vld [vmem:[%s0 + $0x18] sm:$0xf]
    %v49 = vunpack.c.l.bf16 %v45
    %v50 = vunpack.c.h.bf16 %v45
    %v51 = vunpack.c.l.bf16 %v46
    %v52 = vunpack.c.h.bf16 %v46
    %v53 = vunpack.c.l.bf16 %v47
    %v54 = vunpack.c.h.bf16 %v47
    %v55 = vunpack.c.l.bf16 %v48
    %56 = vrot.lane.b32.xlu0 %v49, 127
    %v57 = vpop.permute.xlu0 %56
    %58 = vrot.lane.b32.xlu0 %v50, 127
    %v59 = vpop.permute.xlu0 %58
    %60 = vrot.lane.b32.xlu0 %v51, 127
    %v61 = vpop.permute.xlu0 %60
    %62 = vrot.lane.b32.xlu0 %v52, 127
    %v63 = vpop.permute.xlu0 %62
    %64 = vrot.lane.b32.xlu0 %v53, 127
    %v65 = vpop.permute.xlu0 %64
    %66 = vrot.lane.b32.xlu0 %v54, 127
    %v67 = vpop.permute.xlu0 %66
    %68 = vrot.lane.b32.xlu0 %v55, 127
    %v69 = vpop.permute.xlu0 %68
    %v70 = vlaneseq
    %v71 = vand.u32 %v70, 127
    %vm72 = vcmp.lt.s32.totalorder %v71, 127
    %v73 = vsel %vm72, %v67, %v69
    %v74 = vsel %vm72, %v65, %v67
    %v75 = vsel %vm72, %v63, %v65
    %v76 = vsel %vm72, %v61, %v63
    %v77 = vsel %vm72, %v59, %v61
    %v78 = vsel %vm72, %v57, %v59
    %v79 = vsel %vm72, %v69, %v57
    %80 = vrot.lane.b32.xlu0 %v49, 126
    %v81 = vpop.permute.xlu0 %80
    %82 = vrot.lane.b32.xlu0 %v50, 126
    %v83 = vpop.permute.xlu0 %82
    %84 = vrot.lane.b32.xlu0 %v51, 126
    %v85 = vpop.permute.xlu0 %84
    %86 = vrot.lane.b32.xlu0 %v52, 126
    %v87 = vpop.permute.xlu0 %86
    %88 = vrot.lane.b32.xlu0 %v53, 126
    %v89 = vpop.permute.xlu0 %88
    %90 = vrot.lane.b32.xlu0 %v54, 126
    %v91 = vpop.permute.xlu0 %90
    %92 = vrot.lane.b32.xlu0 %v55, 126
    %v93 = vpop.permute.xlu0 %92
    %vm94 = vcmp.lt.s32.totalorder %v71, 126
    %v95 = vsel %vm94, %v91, %v93
    %v96 = vsel %vm94, %v89, %v91
    %v97 = vsel %vm94, %v87, %v89
    %v98 = vsel %vm94, %v85, %v87
    %v99 = vsel %vm94, %v83, %v85
    %v100 = vsel %vm94, %v81, %v83
    %v101 = vsel %vm94, %v93, %v81
    %102 = vrot.lane.b32.xlu0 %v49, 125
    %v103 = vpop.permute.xlu0 %102
    %104 = vrot.lane.b32.xlu0 %v50, 125
    %v105 = vpop.permute.xlu0 %104
    %106 = vrot.lane.b32.xlu0 %v51, 125
    %v107 = vpop.permute.xlu0 %106
    %108 = vrot.lane.b32.xlu0 %v52, 125
    %v109 = vpop.permute.xlu0 %108
    %110 = vrot.lane.b32.xlu0 %v53, 125
    %v111 = vpop.permute.xlu0 %110
    %112 = vrot.lane.b32.xlu0 %v54, 125
    %v113 = vpop.permute.xlu0 %112
    %114 = vrot.lane.b32.xlu0 %v55, 125
    %v115 = vpop.permute.xlu0 %114
    %vm116 = vcmp.lt.s32.totalorder %v71, 125
    %v117 = vsel %vm116, %v113, %v115
    %v118 = vsel %vm116, %v111, %v113
    %v119 = vsel %vm116, %v109, %v111
    %v120 = vsel %vm116, %v107, %v109
    %v121 = vsel %vm116, %v105, %v107
    %v122 = vsel %vm116, %v103, %v105
    %v123 = vsel %vm116, %v115, %v103
    %s124 = sld [smem:[#allocation2]]
    %v125 = vstv %s124
    %v126 = vmul.f32 %v49, %v125
    %v127 = vmul.f32 %v50, %v125
    %v128 = vmul.f32 %v51, %v125
    %v129 = vmul.f32 %v52, %v125
    %v130 = vmul.f32 %v53, %v125
    %v131 = vmul.f32 %v54, %v125
    %v132 = vmul.f32 %v55, %v125
    %s133 = sld [smem:[#allocation2 + $0x1]]
    %v134 = vstv %s133
    %v135 = vmul.f32 %v78, %v134
    %v136 = vmul.f32 %v77, %v134
    %v137 = vmul.f32 %v76, %v134
    %v138 = vmul.f32 %v75, %v134
    %v139 = vmul.f32 %v74, %v134
    %v140 = vmul.f32 %v73, %v134
    %v141 = vmul.f32 %v79, %v134
    %v142 = vadd.f32 %v126, %v135
    %v143 = vadd.f32 %v127, %v136
    %v144 = vadd.f32 %v128, %v137
    %v145 = vadd.f32 %v129, %v138
    %v146 = vadd.f32 %v130, %v139
    %v147 = vadd.f32 %v131, %v140
    %v148 = vadd.f32 %v132, %v141
    %s149 = sld [smem:[#allocation2 + $0x2]]
    %v150 = vstv %s149
    %v151 = vmul.f32 %v100, %v150
    %v152 = vmul.f32 %v99, %v150
    %v153 = vmul.f32 %v98, %v150
    %v154 = vmul.f32 %v97, %v150
    %v155 = vmul.f32 %v96, %v150
    %v156 = vmul.f32 %v95, %v150
    %v157 = vmul.f32 %v101, %v150
    %v158 = vadd.f32 %v142, %v151
    %v159 = vadd.f32 %v143, %v152
    %v160 = vadd.f32 %v144, %v153
    %v161 = vadd.f32 %v145, %v154
    %v162 = vadd.f32 %v146, %v155
    %v163 = vadd.f32 %v147, %v156
    %v164 = vadd.f32 %v148, %v157
    %s165 = sld [smem:[#allocation2 + $0x3]]
    %v166 = vstv %s165
    %v167 = vmul.f32 %v122, %v166
    %v168 = vmul.f32 %v121, %v166
    %v169 = vmul.f32 %v120, %v166
    %v170 = vmul.f32 %v119, %v166
    %v171 = vmul.f32 %v118, %v166
    %v172 = vmul.f32 %v117, %v166
    %v173 = vmul.f32 %v123, %v166
    %v174 = vadd.f32 %v158, %v167
    %v175 = vadd.f32 %v159, %v168
    %v176 = vadd.f32 %v160, %v169
    %v177 = vadd.f32 %v161, %v170
    %v178 = vadd.f32 %v162, %v171
    %v179 = vadd.f32 %v163, %v172
    %v180 = vadd.f32 %v164, %v173
    %s181 = sld [smem:[#allocation4]]
    %v182 = vstv %s181
    %v183 = vadd.f32 %v174, %v182
    %v184 = vadd.f32 %v175, %v182
    %v185 = vadd.f32 %v176, %v182
    %v186 = vadd.f32 %v177, %v182
    %v187 = vadd.f32 %v178, %v182
    %v188 = vadd.f32 %v179, %v182
    %v189 = vadd.f32 %v180, %v182
    %v190 = vmax.f32 %v183, 0.0
    %v191 = vmax.f32 %v184, 0.0
    %v192 = vmax.f32 %v185, 0.0
    %v193 = vmax.f32 %v186, 0.0
    %v194 = vmax.f32 %v187, 0.0
    %v195 = vmax.f32 %v188, 0.0
    %v196 = vmax.f32 %v189, 0.0
    %v197 = vpack.c.bf16 %v190, %v190
    %v198 = vpack.c.bf16 %v191, %v191
    %v199 = vpack.c.bf16 %v192, %v192
    %v200 = vpack.c.bf16 %v193, %v193
    %v201 = vpack.c.bf16 %v194, %v194
    %v202 = vpack.c.bf16 %v195, %v195
    %v203 = vpack.c.bf16 %v196, %v196
    %v204 = vld [vmem:[%s3] sm:$0xf]
    %v205 = vld [vmem:[%s3 + $0x4] sm:$0xf]
    %v206 = vld [vmem:[%s3 + $0x8] sm:$0xf]
    %v207 = vld [vmem:[%s3 + $0xc] sm:$0xf]
    %v208 = vld [vmem:[%s3 + $0x10] sm:$0xf]
    %v209 = vld [vmem:[%s3 + $0x14] sm:$0xf]
    %v210 = vld [vmem:[%s3 + $0x18] sm:$0xf]
    %v211 = vld [vmem:[%s3 + $0x1c] sm:$0xf]
    %v212 = vld [vmem:[%s3 + $0x20] sm:$0xf]
    %v213 = vld [vmem:[%s3 + $0x24] sm:$0xf]
    %v214 = vld [vmem:[%s3 + $0x28] sm:$0xf]
    %v215 = vld [vmem:[%s3 + $0x2c] sm:$0xf]
    %v216 = vld [vmem:[%s3 + $0x30] sm:$0xf]
    %v217 = vld [vmem:[%s3 + $0x34] sm:$0xf]
    %v218 = vld [vmem:[%s3 + $0x38] sm:$0xf]
    %v219 = vld [vmem:[%s3 + $0x3c] sm:$0xf]
    %v220 = vld [vmem:[%s3 + $0x40] sm:$0xf]
    %v221 = vld [vmem:[%s3 + $0x44] sm:$0xf]
    %v222 = vld [vmem:[%s3 + $0x48] sm:$0xf]
    %v223 = vld [vmem:[%s3 + $0x4c] sm:$0xf]
    %v224 = vld [vmem:[%s3 + $0x50] sm:$0xf]
    %v225 = vld [vmem:[%s3 + $0x54] sm:$0xf]
    %v226 = vld [vmem:[%s3 + $0x58] sm:$0xf]
    %v227 = vld [vmem:[%s3 + $0x5c] sm:$0xf]
    %v228 = vld [vmem:[%s3 + $0x60] sm:$0xf]
    %v229 = vld [vmem:[%s3 + $0x64] sm:$0xf]
    %v230 = vld [vmem:[%s3 + $0x68] sm:$0xf]
    %v231 = vld [vmem:[%s3 + $0x6c] sm:$0xf]
    %v232 = vld [vmem:[%s3 + $0x70] sm:$0xf]
    %v233 = vld [vmem:[%s3 + $0x74] sm:$0xf]
    %v234 = vld [vmem:[%s3 + $0x78] sm:$0xf]
    %v235 = vld [vmem:[%s3 + $0x7c] sm:$0xf]
    %v236 = vld [vmem:[%s3 + $0x80] sm:$0xf]
    %v237 = vld [vmem:[%s3 + $0x84] sm:$0xf]
    %v238 = vld [vmem:[%s3 + $0x88] sm:$0xf]
    %v239 = vld [vmem:[%s3 + $0x8c] sm:$0xf]
    %v240 = vld [vmem:[%s3 + $0x90] sm:$0xf]
    %v241 = vld [vmem:[%s3 + $0x94] sm:$0xf]
    %v242 = vld [vmem:[%s3 + $0x98] sm:$0xf]
    %v243 = vld [vmem:[%s3 + $0x9c] sm:$0xf]
    %v244 = vld [vmem:[%s3 + $0xa0] sm:$0xf]
    %v245 = vld [vmem:[%s3 + $0xa4] sm:$0xf]
    %v246 = vld [vmem:[%s3 + $0xa8] sm:$0xf]
    %v247 = vld [vmem:[%s3 + $0xac] sm:$0xf]
    %v248 = vld [vmem:[%s3 + $0xb0] sm:$0xf]
    %v249 = vld [vmem:[%s3 + $0xb4] sm:$0xf]
    %v250 = vld [vmem:[%s3 + $0xb8] sm:$0xf]
    %v251 = vld [vmem:[%s3 + $0xbc] sm:$0xf]
    %v252 = vld [vmem:[%s3 + $0xc0] sm:$0xf]
    %v253 = vld [vmem:[%s3 + $0xc4] sm:$0xf]
    %v254 = vld [vmem:[%s3 + $0xc8] sm:$0xf]
    %v255 = vld [vmem:[%s3 + $0xcc] sm:$0xf]
    %v256 = vld [vmem:[%s3 + $0xd0] sm:$0xf]
    %v257 = vld [vmem:[%s3 + $0xd4] sm:$0xf]
    %v258 = vld [vmem:[%s3 + $0xd8] sm:$0xf]
    %v259 = vld [vmem:[%s3 + $0xdc] sm:$0xf]
    %v260 = vld [vmem:[%s3 + $0xe0] sm:$0xf]
    %v261 = vld [vmem:[%s3 + $0xe4] sm:$0xf]
    %v262 = vld [vmem:[%s3 + $0xe8] sm:$0xf]
    %v263 = vld [vmem:[%s3 + $0xec] sm:$0xf]
    %v264 = vld [vmem:[%s3 + $0xf0] sm:$0xf]
    %v265 = vld [vmem:[%s3 + $0xf4] sm:$0xf]
    %v266 = vld [vmem:[%s3 + $0xf8] sm:$0xf]
    %v267 = vld [vmem:[%s3 + $0xfc] sm:$0xf]
    %v268 = vld [vmem:[%s3 + $0x100] sm:$0xf]
    %v269 = vld [vmem:[%s3 + $0x104] sm:$0xf]
    %v270 = vld [vmem:[%s3 + $0x108] sm:$0xf]
    %v271 = vld [vmem:[%s3 + $0x10c] sm:$0xf]
    %v272 = vld [vmem:[%s3 + $0x110] sm:$0xf]
    %v273 = vld [vmem:[%s3 + $0x114] sm:$0xf]
    %v274 = vld [vmem:[%s3 + $0x118] sm:$0xf]
    %v275 = vld [vmem:[%s3 + $0x11c] sm:$0xf]
    %v276 = vld [vmem:[%s3 + $0x120] sm:$0xf]
    %v277 = vld [vmem:[%s3 + $0x124] sm:$0xf]
    %v278 = vld [vmem:[%s3 + $0x128] sm:$0xf]
    %v279 = vld [vmem:[%s3 + $0x12c] sm:$0xf]
    %v280 = vld [vmem:[%s3 + $0x130] sm:$0xf]
    %v281 = vld [vmem:[%s3 + $0x134] sm:$0xf]
    %v282 = vld [vmem:[%s3 + $0x138] sm:$0xf]
    %v283 = vld [vmem:[%s3 + $0x13c] sm:$0xf]
    %v284 = vld [vmem:[%s3 + $0x140] sm:$0xf]
    %v285 = vld [vmem:[%s3 + $0x144] sm:$0xf]
    %v286 = vld [vmem:[%s3 + $0x148] sm:$0xf]
    %v287 = vld [vmem:[%s3 + $0x14c] sm:$0xf]
    %v288 = vld [vmem:[%s3 + $0x150] sm:$0xf]
    %v289 = vld [vmem:[%s3 + $0x154] sm:$0xf]
    %v290 = vld [vmem:[%s3 + $0x158] sm:$0xf]
    %v291 = vld [vmem:[%s3 + $0x15c] sm:$0xf]
    %v292 = vld [vmem:[%s3 + $0x160] sm:$0xf]
    %v293 = vld [vmem:[%s3 + $0x164] sm:$0xf]
    %v294 = vld [vmem:[%s3 + $0x168] sm:$0xf]
    %v295 = vld [vmem:[%s3 + $0x16c] sm:$0xf]
    %v296 = vld [vmem:[%s3 + $0x170] sm:$0xf]
    %v297 = vld [vmem:[%s3 + $0x174] sm:$0xf]
    %v298 = vld [vmem:[%s3 + $0x178] sm:$0xf]
    %v299 = vld [vmem:[%s3 + $0x17c] sm:$0xf]
    %v300 = vld [vmem:[%s3 + $0x180] sm:$0xf]
    %v301 = vld [vmem:[%s3 + $0x184] sm:$0xf]
    %v302 = vld [vmem:[%s3 + $0x188] sm:$0xf]
    %v303 = vld [vmem:[%s3 + $0x18c] sm:$0xf]
    %v304 = vld [vmem:[%s3 + $0x190] sm:$0xf]
    %v305 = vld [vmem:[%s3 + $0x194] sm:$0xf]
    %v306 = vld [vmem:[%s3 + $0x198] sm:$0xf]
    %v307 = vld [vmem:[%s3 + $0x19c] sm:$0xf]
    %v308 = vld [vmem:[%s3 + $0x1a0] sm:$0xf]
    %v309 = vld [vmem:[%s3 + $0x1a4] sm:$0xf]
    %v310 = vld [vmem:[%s3 + $0x1a8] sm:$0xf]
    %v311 = vld [vmem:[%s3 + $0x1ac] sm:$0xf]
    %v312 = vld [vmem:[%s3 + $0x1b0] sm:$0xf]
    %v313 = vld [vmem:[%s3 + $0x1b4] sm:$0xf]
    %v314 = vld [vmem:[%s3 + $0x1b8] sm:$0xf]
    %v315 = vld [vmem:[%s3 + $0x1bc] sm:$0xf]
    %s316 = sld [smem:[#allocation2 + $0x80]]
    %v317 = vstv %s316
    %v318 = vmul.f32 %v49, %v317
    %v319 = vmul.f32 %v50, %v317
    %v320 = vmul.f32 %v51, %v317
    %v321 = vmul.f32 %v52, %v317
    %v322 = vmul.f32 %v53, %v317
    %v323 = vmul.f32 %v54, %v317
    %v324 = vmul.f32 %v55, %v317
    %s325 = sld [smem:[#allocation2 + $0x81]]
    %v326 = vstv %s325
    %v327 = vmul.f32 %v78, %v326
    %v328 = vmul.f32 %v77, %v326
    %v329 = vmul.f32 %v76, %v326
    %v330 = vmul.f32 %v75, %v326
    %v331 = vmul.f32 %v74, %v326
    %v332 = vmul.f32 %v73, %v326
    %v333 = vmul.f32 %v79, %v326
    %v334 = vadd.f32 %v318, %v327
    %v335 = vadd.f32 %v319, %v328
    %v336 = vadd.f32 %v320, %v329
    %v337 = vadd.f32 %v321, %v330
    %v338 = vadd.f32 %v322, %v331
    %v339 = vadd.f32 %v323, %v332
    %v340 = vadd.f32 %v324, %v333
    %s341 = sld [smem:[#allocation2 + $0x82]]
    %v342 = vstv %s341
    %v343 = vmul.f32 %v100, %v342
    %v344 = vmul.f32 %v99, %v342
    %v345 = vmul.f32 %v98, %v342
    %v346 = vmul.f32 %v97, %v342
    %v347 = vmul.f32 %v96, %v342
    %v348 = vmul.f32 %v95, %v342
    %v349 = vmul.f32 %v101, %v342
    %v350 = vadd.f32 %v334, %v343
    %v351 = vadd.f32 %v335, %v344
    %v352 = vadd.f32 %v336, %v345
    %v353 = vadd.f32 %v337, %v346
    %v354 = vadd.f32 %v338, %v347
    %v355 = vadd.f32 %v339, %v348
    %v356 = vadd.f32 %v340, %v349
    %s357 = sld [smem:[#allocation2 + $0x83]]
    %v358 = vstv %s357
    %v359 = vmul.f32 %v122, %v358
    %v360 = vmul.f32 %v121, %v358
    %v361 = vmul.f32 %v120, %v358
    %v362 = vmul.f32 %v119, %v358
    %v363 = vmul.f32 %v118, %v358
    %v364 = vmul.f32 %v117, %v358
    %v365 = vmul.f32 %v123, %v358
    %v366 = vadd.f32 %v350, %v359
    %v367 = vadd.f32 %v351, %v360
    %v368 = vadd.f32 %v352, %v361
    %v369 = vadd.f32 %v353, %v362
    %v370 = vadd.f32 %v354, %v363
    %v371 = vadd.f32 %v355, %v364
    %v372 = vadd.f32 %v356, %v365
    %s373 = sld [smem:[#allocation4 + $0x1]]
    %v374 = vstv %s373
    %v375 = vadd.f32 %v366, %v374
    %v376 = vadd.f32 %v367, %v374
    %v377 = vadd.f32 %v368, %v374
    %v378 = vadd.f32 %v369, %v374
    %v379 = vadd.f32 %v370, %v374
    %v380 = vadd.f32 %v371, %v374
    %v381 = vadd.f32 %v372, %v374
    %v382 = vmax.f32 %v375, 0.0
    %v383 = vmax.f32 %v376, 0.0
    %v384 = vmax.f32 %v377, 0.0
    %v385 = vmax.f32 %v378, 0.0
    %v386 = vmax.f32 %v379, 0.0
    %v387 = vmax.f32 %v380, 0.0
    %v388 = vmax.f32 %v381, 0.0
    %v389 = vpack.c.bf16 %v382, %v382
    %v390 = vpack.c.bf16 %v383, %v383
    %v391 = vpack.c.bf16 %v384, %v384
    %v392 = vpack.c.bf16 %v385, %v385
    %v393 = vpack.c.bf16 %v386, %v386
    %v394 = vpack.c.bf16 %v387, %v387
    %v395 = vpack.c.bf16 %v388, %v388
    %v396 = vld [vmem:[%s3 + $0x1c0] sm:$0xf]
    %v397 = vld [vmem:[%s3 + $0x1c4] sm:$0xf]
    %v398 = vld [vmem:[%s3 + $0x1c8] sm:$0xf]
    %v399 = vld [vmem:[%s3 + $0x1cc] sm:$0xf]
    %v400 = vld [vmem:[%s3 + $0x1d0] sm:$0xf]
    %v401 = vld [vmem:[%s3 + $0x1d4] sm:$0xf]
    %v402 = vld [vmem:[%s3 + $0x1d8] sm:$0xf]
    %v403 = vld [vmem:[%s3 + $0x1dc] sm:$0xf]
    %v404 = vld [vmem:[%s3 + $0x1e0] sm:$0xf]
    %v405 = vld [vmem:[%s3 + $0x1e4] sm:$0xf]
    %v406 = vld [vmem:[%s3 + $0x1e8] sm:$0xf]
    %v407 = vld [vmem:[%s3 + $0x1ec] sm:$0xf]
    %v408 = vld [vmem:[%s3 + $0x1f0] sm:$0xf]
    %v409 = vld [vmem:[%s3 + $0x1f4] sm:$0xf]
    %v410 = vld [vmem:[%s3 + $0x1f8] sm:$0xf]
    %v411 = vld [vmem:[%s3 + $0x1fc] sm:$0xf]
    %v412 = vld [vmem:[%s3 + $0x200] sm:$0xf]
    %v413 = vld [vmem:[%s3 + $0x204] sm:$0xf]
    %v414 = vld [vmem:[%s3 + $0x208] sm:$0xf]
    %v415 = vld [vmem:[%s3 + $0x20c] sm:$0xf]
    %v416 = vld [vmem:[%s3 + $0x210] sm:$0xf]
    %v417 = vld [vmem:[%s3 + $0x214] sm:$0xf]
    %v418 = vld [vmem:[%s3 + $0x218] sm:$0xf]
    %v419 = vld [vmem:[%s3 + $0x21c] sm:$0xf]
    %v420 = vld [vmem:[%s3 + $0x220] sm:$0xf]
    %v421 = vld [vmem:[%s3 + $0x224] sm:$0xf]
    %v422 = vld [vmem:[%s3 + $0x228] sm:$0xf]
    %v423 = vld [vmem:[%s3 + $0x22c] sm:$0xf]
    %v424 = vld [vmem:[%s3 + $0x230] sm:$0xf]
    %v425 = vld [vmem:[%s3 + $0x234] sm:$0xf]
    %v426 = vld [vmem:[%s3 + $0x238] sm:$0xf]
    %v427 = vld [vmem:[%s3 + $0x23c] sm:$0xf]
    %v428 = vld [vmem:[%s3 + $0x240] sm:$0xf]
    %v429 = vld [vmem:[%s3 + $0x244] sm:$0xf]
    %v430 = vld [vmem:[%s3 + $0x248] sm:$0xf]
    %v431 = vld [vmem:[%s3 + $0x24c] sm:$0xf]
    %v432 = vld [vmem:[%s3 + $0x250] sm:$0xf]
    %v433 = vld [vmem:[%s3 + $0x254] sm:$0xf]
    %v434 = vld [vmem:[%s3 + $0x258] sm:$0xf]
    %v435 = vld [vmem:[%s3 + $0x25c] sm:$0xf]
    %v436 = vld [vmem:[%s3 + $0x260] sm:$0xf]
    %v437 = vld [vmem:[%s3 + $0x264] sm:$0xf]
    %v438 = vld [vmem:[%s3 + $0x268] sm:$0xf]
    %v439 = vld [vmem:[%s3 + $0x26c] sm:$0xf]
    %v440 = vld [vmem:[%s3 + $0x270] sm:$0xf]
    %v441 = vld [vmem:[%s3 + $0x274] sm:$0xf]
    %v442 = vld [vmem:[%s3 + $0x278] sm:$0xf]
    %v443 = vld [vmem:[%s3 + $0x27c] sm:$0xf]
    %v444 = vld [vmem:[%s3 + $0x280] sm:$0xf]
    %v445 = vld [vmem:[%s3 + $0x284] sm:$0xf]
    %v446 = vld [vmem:[%s3 + $0x288] sm:$0xf]
    %v447 = vld [vmem:[%s3 + $0x28c] sm:$0xf]
    %v448 = vld [vmem:[%s3 + $0x290] sm:$0xf]
    %v449 = vld [vmem:[%s3 + $0x294] sm:$0xf]
    %v450 = vld [vmem:[%s3 + $0x298] sm:$0xf]
    %v451 = vld [vmem:[%s3 + $0x29c] sm:$0xf]
    %v452 = vld [vmem:[%s3 + $0x2a0] sm:$0xf]
    %v453 = vld [vmem:[%s3 + $0x2a4] sm:$0xf]
    %v454 = vld [vmem:[%s3 + $0x2a8] sm:$0xf]
    %v455 = vld [vmem:[%s3 + $0x2ac] sm:$0xf]
    %v456 = vld [vmem:[%s3 + $0x2b0] sm:$0xf]
    %v457 = vld [vmem:[%s3 + $0x2b4] sm:$0xf]
    %v458 = vld [vmem:[%s3 + $0x2b8] sm:$0xf]
    %v459 = vld [vmem:[%s3 + $0x2bc] sm:$0xf]
    %v460 = vld [vmem:[%s3 + $0x2c0] sm:$0xf]
    %v461 = vld [vmem:[%s3 + $0x2c4] sm:$0xf]
    %v462 = vld [vmem:[%s3 + $0x2c8] sm:$0xf]
    %v463 = vld [vmem:[%s3 + $0x2cc] sm:$0xf]
    %v464 = vld [vmem:[%s3 + $0x2d0] sm:$0xf]
    %v465 = vld [vmem:[%s3 + $0x2d4] sm:$0xf]
    %v466 = vld [vmem:[%s3 + $0x2d8] sm:$0xf]
    %v467 = vld [vmem:[%s3 + $0x2dc] sm:$0xf]
    %v468 = vld [vmem:[%s3 + $0x2e0] sm:$0xf]
    %v469 = vld [vmem:[%s3 + $0x2e4] sm:$0xf]
    %v470 = vld [vmem:[%s3 + $0x2e8] sm:$0xf]
    %v471 = vld [vmem:[%s3 + $0x2ec] sm:$0xf]
    %v472 = vld [vmem:[%s3 + $0x2f0] sm:$0xf]
    %v473 = vld [vmem:[%s3 + $0x2f4] sm:$0xf]
    %v474 = vld [vmem:[%s3 + $0x2f8] sm:$0xf]
    %v475 = vld [vmem:[%s3 + $0x2fc] sm:$0xf]
    %v476 = vld [vmem:[%s3 + $0x300] sm:$0xf]
    %v477 = vld [vmem:[%s3 + $0x304] sm:$0xf]
    %v478 = vld [vmem:[%s3 + $0x308] sm:$0xf]
    %v479 = vld [vmem:[%s3 + $0x30c] sm:$0xf]
    %v480 = vld [vmem:[%s3 + $0x310] sm:$0xf]
    %v481 = vld [vmem:[%s3 + $0x314] sm:$0xf]
    %v482 = vld [vmem:[%s3 + $0x318] sm:$0xf]
    %v483 = vld [vmem:[%s3 + $0x31c] sm:$0xf]
    %v484 = vld [vmem:[%s3 + $0x320] sm:$0xf]
    %v485 = vld [vmem:[%s3 + $0x324] sm:$0xf]
    %v486 = vld [vmem:[%s3 + $0x328] sm:$0xf]
    %v487 = vld [vmem:[%s3 + $0x32c] sm:$0xf]
    %v488 = vld [vmem:[%s3 + $0x330] sm:$0xf]
    %v489 = vld [vmem:[%s3 + $0x334] sm:$0xf]
    %v490 = vld [vmem:[%s3 + $0x338] sm:$0xf]
    %v491 = vld [vmem:[%s3 + $0x33c] sm:$0xf]
    %v492 = vld [vmem:[%s3 + $0x340] sm:$0xf]
    %v493 = vld [vmem:[%s3 + $0x344] sm:$0xf]
    %v494 = vld [vmem:[%s3 + $0x348] sm:$0xf]
    %v495 = vld [vmem:[%s3 + $0x34c] sm:$0xf]
    %v496 = vld [vmem:[%s3 + $0x350] sm:$0xf]
    %v497 = vld [vmem:[%s3 + $0x354] sm:$0xf]
    %v498 = vld [vmem:[%s3 + $0x358] sm:$0xf]
    %v499 = vld [vmem:[%s3 + $0x35c] sm:$0xf]
    %v500 = vld [vmem:[%s3 + $0x360] sm:$0xf]
    %v501 = vld [vmem:[%s3 + $0x364] sm:$0xf]
    %v502 = vld [vmem:[%s3 + $0x368] sm:$0xf]
    %v503 = vld [vmem:[%s3 + $0x36c] sm:$0xf]
    %v504 = vld [vmem:[%s3 + $0x370] sm:$0xf]
    %v505 = vld [vmem:[%s3 + $0x374] sm:$0xf]
    %v506 = vld [vmem:[%s3 + $0x378] sm:$0xf]
    %v507 = vld [vmem:[%s3 + $0x37c] sm:$0xf]
    %v620 = vunpack.c.l.b16 %v396
    %v621 = vunpack.c.l.b16 %v397
    %v622 = vunpack.c.l.b16 %v398
    %v623 = vunpack.c.l.b16 %v399
    %v624 = vunpack.c.l.b16 %v400
    %v625 = vunpack.c.l.b16 %v401
    %v626 = vunpack.c.l.b16 %v402
    %v627 = vunpack.c.l.b16 %v403
    %v628 = vunpack.c.l.b16 %v404
    %v629 = vunpack.c.l.b16 %v405
    %v630 = vunpack.c.l.b16 %v406
    %v631 = vunpack.c.l.b16 %v407
    %v632 = vunpack.c.l.b16 %v408
    %v633 = vunpack.c.l.b16 %v409
    %v634 = vunpack.c.l.b16 %v410
    %v635 = vunpack.c.l.b16 %v411
    %v636 = vunpack.c.l.b16 %v412
    %v637 = vunpack.c.l.b16 %v413
    %v638 = vunpack.c.l.b16 %v414
    %v639 = vunpack.c.l.b16 %v415
    %v640 = vunpack.c.l.b16 %v416
    %v641 = vunpack.c.l.b16 %v417
    %v642 = vunpack.c.l.b16 %v418
    %v643 = vunpack.c.l.b16 %v419
    %v644 = vunpack.c.l.b16 %v420
    %v645 = vunpack.c.l.b16 %v421
    %v646 = vunpack.c.l.b16 %v422
    %v647 = vunpack.c.l.b16 %v423
    %v648 = vunpack.c.l.b16 %v424
    %v649 = vunpack.c.l.b16 %v425
    %v650 = vunpack.c.l.b16 %v426
    %v651 = vunpack.c.l.b16 %v427
    %v652 = vunpack.c.l.b16 %v428
    %v653 = vunpack.c.l.b16 %v429
    %v654 = vunpack.c.l.b16 %v430
    %v655 = vunpack.c.l.b16 %v431
    %v656 = vunpack.c.l.b16 %v432
    %v657 = vunpack.c.l.b16 %v433
    %v658 = vunpack.c.l.b16 %v434
    %v659 = vunpack.c.l.b16 %v435
    %v660 = vunpack.c.l.b16 %v436
    %v661 = vunpack.c.l.b16 %v437
    %v662 = vunpack.c.l.b16 %v438
    %v663 = vunpack.c.l.b16 %v439
    %v664 = vunpack.c.l.b16 %v440
    %v665 = vunpack.c.l.b16 %v441
    %v666 = vunpack.c.l.b16 %v442
    %v667 = vunpack.c.l.b16 %v443
    %v668 = vunpack.c.l.b16 %v444
    %v669 = vunpack.c.l.b16 %v445
    %v670 = vunpack.c.l.b16 %v446
    %v671 = vunpack.c.l.b16 %v447
    %v672 = vunpack.c.l.b16 %v448
    %v673 = vunpack.c.l.b16 %v449
    %v674 = vunpack.c.l.b16 %v450
    %v675 = vunpack.c.l.b16 %v451
    %v676 = vunpack.c.l.b16 %v452
    %v677 = vunpack.c.l.b16 %v453
    %v678 = vunpack.c.l.b16 %v454
    %v679 = vunpack.c.l.b16 %v455
    %v680 = vunpack.c.l.b16 %v456
    %v681 = vunpack.c.l.b16 %v457
    %v682 = vunpack.c.l.b16 %v458
    %v683 = vunpack.c.l.b16 %v459
    %v684 = vunpack.c.l.b16 %v460
    %v685 = vunpack.c.l.b16 %v461
    %v686 = vunpack.c.l.b16 %v462
    %v687 = vunpack.c.l.b16 %v463
    %v688 = vunpack.c.l.b16 %v464
    %v689 = vunpack.c.l.b16 %v465
    %v690 = vunpack.c.l.b16 %v466
    %v691 = vunpack.c.l.b16 %v467
    %v692 = vunpack.c.l.b16 %v468
    %v693 = vunpack.c.l.b16 %v469
    %v694 = vunpack.c.l.b16 %v470
    %v695 = vunpack.c.l.b16 %v471
    %v696 = vunpack.c.l.b16 %v472
    %v697 = vunpack.c.l.b16 %v473
    %v698 = vunpack.c.l.b16 %v474
    %v699 = vunpack.c.l.b16 %v475
    %v700 = vunpack.c.l.b16 %v476
    %v701 = vunpack.c.l.b16 %v477
    %v702 = vunpack.c.l.b16 %v478
    %v703 = vunpack.c.l.b16 %v479
    %v704 = vunpack.c.l.b16 %v480
    %v705 = vunpack.c.l.b16 %v481
    %v706 = vunpack.c.l.b16 %v482
    %v707 = vunpack.c.l.b16 %v483
    %v708 = vunpack.c.l.b16 %v484
    %v709 = vunpack.c.l.b16 %v485
    %v710 = vunpack.c.l.b16 %v486
    %v711 = vunpack.c.l.b16 %v487
    %v712 = vunpack.c.l.b16 %v488
    %v713 = vunpack.c.l.b16 %v489
    %v714 = vunpack.c.l.b16 %v490
    %v715 = vunpack.c.l.b16 %v491
    %v716 = vunpack.c.l.b16 %v492
    %v717 = vunpack.c.l.b16 %v493
    %v718 = vunpack.c.l.b16 %v494
    %v719 = vunpack.c.l.b16 %v495
    %v720 = vunpack.c.l.b16 %v496
    %v721 = vunpack.c.l.b16 %v497
    %v722 = vunpack.c.l.b16 %v498
    %v723 = vunpack.c.l.b16 %v499
    %v724 = vunpack.c.l.b16 %v500
    %v725 = vunpack.c.l.b16 %v501
    %v726 = vunpack.c.l.b16 %v502
    %v727 = vunpack.c.l.b16 %v503
    %v728 = vunpack.c.l.b16 %v504
    %v729 = vunpack.c.l.b16 %v505
    %v730 = vunpack.c.l.b16 %v506
    %v731 = vunpack.c.l.b16 %v507
    %v732 = vpack.c.b16 %v621, %v620
    %v733 = vpack.c.b16 %v623, %v622
    %v734 = vpack.c.b16 %v625, %v624
    %v735 = vpack.c.b16 %v627, %v626
    %v736 = vpack.c.b16 %v629, %v628
    %v737 = vpack.c.b16 %v631, %v630
    %v738 = vpack.c.b16 %v633, %v632
    %v739 = vpack.c.b16 %v635, %v634
    %v740 = vpack.c.b16 %v637, %v636
    %v741 = vpack.c.b16 %v639, %v638
    %v742 = vpack.c.b16 %v641, %v640
    %v743 = vpack.c.b16 %v643, %v642
    %v744 = vpack.c.b16 %v645, %v644
    %v745 = vpack.c.b16 %v647, %v646
    %v746 = vpack.c.b16 %v649, %v648
    %v747 = vpack.c.b16 %v651, %v650
    %v748 = vpack.c.b16 %v653, %v652
    %v749 = vpack.c.b16 %v655, %v654
    %v750 = vpack.c.b16 %v657, %v656
    %v751 = vpack.c.b16 %v659, %v658
    %v752 = vpack.c.b16 %v661, %v660
    %v753 = vpack.c.b16 %v663, %v662
    %v754 = vpack.c.b16 %v665, %v664
    %v755 = vpack.c.b16 %v667, %v666
    %v756 = vpack.c.b16 %v669, %v668
    %v757 = vpack.c.b16 %v671, %v670
    %v758 = vpack.c.b16 %v673, %v672
    %v759 = vpack.c.b16 %v675, %v674
    %v760 = vpack.c.b16 %v677, %v676
    %v761 = vpack.c.b16 %v679, %v678
    %v762 = vpack.c.b16 %v681, %v680
    %v763 = vpack.c.b16 %v683, %v682
    %v764 = vpack.c.b16 %v685, %v684
    %v765 = vpack.c.b16 %v687, %v686
    %v766 = vpack.c.b16 %v689, %v688
    %v767 = vpack.c.b16 %v691, %v690
    %v768 = vpack.c.b16 %v693, %v692
    %v769 = vpack.c.b16 %v695, %v694
    %v770 = vpack.c.b16 %v697, %v696
    %v771 = vpack.c.b16 %v699, %v698
    %v772 = vpack.c.b16 %v701, %v700
    %v773 = vpack.c.b16 %v703, %v702
    %v774 = vpack.c.b16 %v705, %v704
    %v775 = vpack.c.b16 %v707, %v706
    %v776 = vpack.c.b16 %v709, %v708
    %v777 = vpack.c.b16 %v711, %v710
    %v778 = vpack.c.b16 %v713, %v712
    %v779 = vpack.c.b16 %v715, %v714
    %v780 = vpack.c.b16 %v717, %v716
    %v781 = vpack.c.b16 %v719, %v718
    %v782 = vpack.c.b16 %v721, %v720
    %v783 = vpack.c.b16 %v723, %v722
    %v784 = vpack.c.b16 %v725, %v724
    %v785 = vpack.c.b16 %v727, %v726
    %v786 = vpack.c.b16 %v729, %v728
    %v787 = vpack.c.b16 %v731, %v730
    %844 = vmatpush.bf16.msra.mxu0 %v739
    %845 = vmatpush.bf16.msra.mxu0 %v738
    %846 = vmatpush.bf16.msra.mxu0 %v737
    %847 = vmatpush.bf16.msra.mxu0 %v736
    %848 = vmatpush.bf16.msra.mxu0 %v735
    %849 = vmatpush.bf16.msra.mxu0 %v734
    %850 = vmatpush.bf16.msra.mxu0 %v733
    %851 = vmatpush.bf16.msra.mxu0 %v732
    %852 = vmatmul.bf16.gmra.mxu0 %v389
    %v853 = vpop.f32.mrf.mxu0
    %v854 = vadd.f32 0.0, %v853
    %v855 = vpop.f32.mrf.mxu0
    %856 = vdwg.mxu0
    %857 = vmatpush.bf16.msra.mxu0 %v747
    %858 = vmatpush.bf16.msra.mxu0 %v746
    %859 = vmatpush.bf16.msra.mxu0 %v745
    %860 = vmatpush.bf16.msra.mxu0 %v744
    %861 = vmatpush.bf16.msra.mxu0 %v743
    %862 = vmatpush.bf16.msra.mxu0 %v742
    %863 = vmatpush.bf16.msra.mxu0 %v741
    %864 = vmatpush.bf16.msra.mxu0 %v740
    %865 = vmatmul.bf16.gmra.mxu0 %v390
    %v866 = vpop.f32.mrf.mxu0
    %v867 = vadd.f32 %v854, %v866
    %v868 = vpop.f32.mrf.mxu0
    %869 = vdwg.mxu0
    %870 = vmatpush.bf16.msra.mxu0 %v755
    %871 = vmatpush.bf16.msra.mxu0 %v754
    %872 = vmatpush.bf16.msra.mxu0 %v753
    %873 = vmatpush.bf16.msra.mxu0 %v752
    %874 = vmatpush.bf16.msra.mxu0 %v751
    %875 = vmatpush.bf16.msra.mxu0 %v750
    %876 = vmatpush.bf16.msra.mxu0 %v749
    %877 = vmatpush.bf16.msra.mxu0 %v748
    %878 = vmatmul.bf16.gmra.mxu0 %v391
    %v879 = vpop.f32.mrf.mxu0
    %v880 = vadd.f32 %v867, %v879
    %v881 = vpop.f32.mrf.mxu0
    %882 = vdwg.mxu0
    %883 = vmatpush.bf16.msra.mxu0 %v763
    %884 = vmatpush.bf16.msra.mxu0 %v762
    %885 = vmatpush.bf16.msra.mxu0 %v761
    %886 = vmatpush.bf16.msra.mxu0 %v760
    %887 = vmatpush.bf16.msra.mxu0 %v759
    %888 = vmatpush.bf16.msra.mxu0 %v758
    %889 = vmatpush.bf16.msra.mxu0 %v757
    %890 = vmatpush.bf16.msra.mxu0 %v756
    %891 = vmatmul.bf16.gmra.mxu0 %v392
    %v892 = vpop.f32.mrf.mxu0
    %v893 = vadd.f32 %v880, %v892
    %v894 = vpop.f32.mrf.mxu0
    %895 = vdwg.mxu0
    %896 = vmatpush.bf16.msra.mxu0 %v771
    %897 = vmatpush.bf16.msra.mxu0 %v770
    %898 = vmatpush.bf16.msra.mxu0 %v769
    %899 = vmatpush.bf16.msra.mxu0 %v768
    %900 = vmatpush.bf16.msra.mxu0 %v767
    %901 = vmatpush.bf16.msra.mxu0 %v766
    %902 = vmatpush.bf16.msra.mxu0 %v765
    %903 = vmatpush.bf16.msra.mxu0 %v764
    %904 = vmatmul.bf16.gmra.mxu0 %v393
    %v905 = vpop.f32.mrf.mxu0
    %v906 = vadd.f32 %v893, %v905
    %v907 = vpop.f32.mrf.mxu0
    %908 = vdwg.mxu0
    %909 = vmatpush.bf16.msra.mxu0 %v779
    %910 = vmatpush.bf16.msra.mxu0 %v778
    %911 = vmatpush.bf16.msra.mxu0 %v777
    %912 = vmatpush.bf16.msra.mxu0 %v776
    %913 = vmatpush.bf16.msra.mxu0 %v775
    %914 = vmatpush.bf16.msra.mxu0 %v774
    %915 = vmatpush.bf16.msra.mxu0 %v773
    %916 = vmatpush.bf16.msra.mxu0 %v772
    %917 = vmatmul.bf16.gmra.mxu0 %v394
    %v918 = vpop.f32.mrf.mxu0
    %v919 = vadd.f32 %v906, %v918
    %v920 = vpop.f32.mrf.mxu0
    %921 = vdwg.mxu0
    %922 = vmatpush.bf16.msra.mxu0 %v787
    %923 = vmatpush.bf16.msra.mxu0 %v786
    %924 = vmatpush.bf16.msra.mxu0 %v785
    %925 = vmatpush.bf16.msra.mxu0 %v784
    %926 = vmatpush.bf16.msra.mxu0 %v783
    %927 = vmatpush.bf16.msra.mxu0 %v782
    %928 = vmatpush.bf16.msra.mxu0 %v781
    %929 = vmatpush.bf16.msra.mxu0 %v780
    %930 = vmatmul.bf16.gmra.mxu0 %v395
    %v931 = vpop.f32.mrf.mxu0
    %v932 = vadd.f32 %v919, %v931
    %v933 = vpop.f32.mrf.mxu0
    %934 = vdwg.mxu0
    %v1047 = vunpack.c.l.b16 %v204
    %v1048 = vunpack.c.l.b16 %v205
    %v1049 = vunpack.c.l.b16 %v206
    %v1050 = vunpack.c.l.b16 %v207
    %v1051 = vunpack.c.l.b16 %v208
    %v1052 = vunpack.c.l.b16 %v209
    %v1053 = vunpack.c.l.b16 %v210
    %v1054 = vunpack.c.l.b16 %v211
    %v1055 = vunpack.c.l.b16 %v212
    %v1056 = vunpack.c.l.b16 %v213
    %v1057 = vunpack.c.l.b16 %v214
    %v1058 = vunpack.c.l.b16 %v215
    %v1059 = vunpack.c.l.b16 %v216
    %v1060 = vunpack.c.l.b16 %v217
    %v1061 = vunpack.c.l.b16 %v218
    %v1062 = vunpack.c.l.b16 %v219
    %v1063 = vunpack.c.l.b16 %v220
    %v1064 = vunpack.c.l.b16 %v221
    %v1065 = vunpack.c.l.b16 %v222
    %v1066 = vunpack.c.l.b16 %v223
    %v1067 = vunpack.c.l.b16 %v224
    %v1068 = vunpack.c.l.b16 %v225
    %v1069 = vunpack.c.l.b16 %v226
    %v1070 = vunpack.c.l.b16 %v227
    %v1071 = vunpack.c.l.b16 %v228
    %v1072 = vunpack.c.l.b16 %v229
    %v1073 = vunpack.c.l.b16 %v230
    %v1074 = vunpack.c.l.b16 %v231
    %v1075 = vunpack.c.l.b16 %v232
    %v1076 = vunpack.c.l.b16 %v233
    %v1077 = vunpack.c.l.b16 %v234
    %v1078 = vunpack.c.l.b16 %v235
    %v1079 = vunpack.c.l.b16 %v236
    %v1080 = vunpack.c.l.b16 %v237
    %v1081 = vunpack.c.l.b16 %v238
    %v1082 = vunpack.c.l.b16 %v239
    %v1083 = vunpack.c.l.b16 %v240
    %v1084 = vunpack.c.l.b16 %v241
    %v1085 = vunpack.c.l.b16 %v242
    %v1086 = vunpack.c.l.b16 %v243
    %v1087 = vunpack.c.l.b16 %v244
    %v1088 = vunpack.c.l.b16 %v245
    %v1089 = vunpack.c.l.b16 %v246
    %v1090 = vunpack.c.l.b16 %v247
    %v1091 = vunpack.c.l.b16 %v248
    %v1092 = vunpack.c.l.b16 %v249
    %v1093 = vunpack.c.l.b16 %v250
    %v1094 = vunpack.c.l.b16 %v251
    %v1095 = vunpack.c.l.b16 %v252
    %v1096 = vunpack.c.l.b16 %v253
    %v1097 = vunpack.c.l.b16 %v254
    %v1098 = vunpack.c.l.b16 %v255
    %v1099 = vunpack.c.l.b16 %v256
    %v1100 = vunpack.c.l.b16 %v257
    %v1101 = vunpack.c.l.b16 %v258
    %v1102 = vunpack.c.l.b16 %v259
    %v1103 = vunpack.c.l.b16 %v260
    %v1104 = vunpack.c.l.b16 %v261
    %v1105 = vunpack.c.l.b16 %v262
    %v1106 = vunpack.c.l.b16 %v263
    %v1107 = vunpack.c.l.b16 %v264
    %v1108 = vunpack.c.l.b16 %v265
    %v1109 = vunpack.c.l.b16 %v266
    %v1110 = vunpack.c.l.b16 %v267
    %v1111 = vunpack.c.l.b16 %v268
    %v1112 = vunpack.c.l.b16 %v269
    %v1113 = vunpack.c.l.b16 %v270
    %v1114 = vunpack.c.l.b16 %v271
    %v1115 = vunpack.c.l.b16 %v272
    %v1116 = vunpack.c.l.b16 %v273
    %v1117 = vunpack.c.l.b16 %v274
    %v1118 = vunpack.c.l.b16 %v275
    %v1119 = vunpack.c.l.b16 %v276
    %v1120 = vunpack.c.l.b16 %v277
    %v1121 = vunpack.c.l.b16 %v278
    %v1122 = vunpack.c.l.b16 %v279
    %v1123 = vunpack.c.l.b16 %v280
    %v1124 = vunpack.c.l.b16 %v281
    %v1125 = vunpack.c.l.b16 %v282
    %v1126 = vunpack.c.l.b16 %v283
    %v1127 = vunpack.c.l.b16 %v284
    %v1128 = vunpack.c.l.b16 %v285
    %v1129 = vunpack.c.l.b16 %v286
    %v1130 = vunpack.c.l.b16 %v287
    %v1131 = vunpack.c.l.b16 %v288
    %v1132 = vunpack.c.l.b16 %v289
    %v1133 = vunpack.c.l.b16 %v290
    %v1134 = vunpack.c.l.b16 %v291
    %v1135 = vunpack.c.l.b16 %v292
    %v1136 = vunpack.c.l.b16 %v293
    %v1137 = vunpack.c.l.b16 %v294
    %v1138 = vunpack.c.l.b16 %v295
    %v1139 = vunpack.c.l.b16 %v296
    %v1140 = vunpack.c.l.b16 %v297
    %v1141 = vunpack.c.l.b16 %v298
    %v1142 = vunpack.c.l.b16 %v299
    %v1143 = vunpack.c.l.b16 %v300
    %v1144 = vunpack.c.l.b16 %v301
    %v1145 = vunpack.c.l.b16 %v302
    %v1146 = vunpack.c.l.b16 %v303
    %v1147 = vunpack.c.l.b16 %v304
    %v1148 = vunpack.c.l.b16 %v305
    %v1149 = vunpack.c.l.b16 %v306
    %v1150 = vunpack.c.l.b16 %v307
    %v1151 = vunpack.c.l.b16 %v308
    %v1152 = vunpack.c.l.b16 %v309
    %v1153 = vunpack.c.l.b16 %v310
    %v1154 = vunpack.c.l.b16 %v311
    %v1155 = vunpack.c.l.b16 %v312
    %v1156 = vunpack.c.l.b16 %v313
    %v1157 = vunpack.c.l.b16 %v314
    %v1158 = vunpack.c.l.b16 %v315
    %v1159 = vpack.c.b16 %v1048, %v1047
    %v1160 = vpack.c.b16 %v1050, %v1049
    %v1161 = vpack.c.b16 %v1052, %v1051
    %v1162 = vpack.c.b16 %v1054, %v1053
    %v1163 = vpack.c.b16 %v1056, %v1055
    %v1164 = vpack.c.b16 %v1058, %v1057
    %v1165 = vpack.c.b16 %v1060, %v1059
    %v1166 = vpack.c.b16 %v1062, %v1061
    %v1167 = vpack.c.b16 %v1064, %v1063
    %v1168 = vpack.c.b16 %v1066, %v1065
    %v1169 = vpack.c.b16 %v1068, %v1067
    %v1170 = vpack.c.b16 %v1070, %v1069
    %v1171 = vpack.c.b16 %v1072, %v1071
    %v1172 = vpack.c.b16 %v1074, %v1073
    %v1173 = vpack.c.b16 %v1076, %v1075
    %v1174 = vpack.c.b16 %v1078, %v1077
    %v1175 = vpack.c.b16 %v1080, %v1079
    %v1176 = vpack.c.b16 %v1082, %v1081
    %v1177 = vpack.c.b16 %v1084, %v1083
    %v1178 = vpack.c.b16 %v1086, %v1085
    %v1179 = vpack.c.b16 %v1088, %v1087
    %v1180 = vpack.c.b16 %v1090, %v1089
    %v1181 = vpack.c.b16 %v1092, %v1091
    %v1182 = vpack.c.b16 %v1094, %v1093
    %v1183 = vpack.c.b16 %v1096, %v1095
    %v1184 = vpack.c.b16 %v1098, %v1097
    %v1185 = vpack.c.b16 %v1100, %v1099
    %v1186 = vpack.c.b16 %v1102, %v1101
    %v1187 = vpack.c.b16 %v1104, %v1103
    %v1188 = vpack.c.b16 %v1106, %v1105
    %v1189 = vpack.c.b16 %v1108, %v1107
    %v1190 = vpack.c.b16 %v1110, %v1109
    %v1191 = vpack.c.b16 %v1112, %v1111
    %v1192 = vpack.c.b16 %v1114, %v1113
    %v1193 = vpack.c.b16 %v1116, %v1115
    %v1194 = vpack.c.b16 %v1118, %v1117
    %v1195 = vpack.c.b16 %v1120, %v1119
    %v1196 = vpack.c.b16 %v1122, %v1121
    %v1197 = vpack.c.b16 %v1124, %v1123
    %v1198 = vpack.c.b16 %v1126, %v1125
    %v1199 = vpack.c.b16 %v1128, %v1127
    %v1200 = vpack.c.b16 %v1130, %v1129
    %v1201 = vpack.c.b16 %v1132, %v1131
    %v1202 = vpack.c.b16 %v1134, %v1133
    %v1203 = vpack.c.b16 %v1136, %v1135
    %v1204 = vpack.c.b16 %v1138, %v1137
    %v1205 = vpack.c.b16 %v1140, %v1139
    %v1206 = vpack.c.b16 %v1142, %v1141
    %v1207 = vpack.c.b16 %v1144, %v1143
    %v1208 = vpack.c.b16 %v1146, %v1145
    %v1209 = vpack.c.b16 %v1148, %v1147
    %v1210 = vpack.c.b16 %v1150, %v1149
    %v1211 = vpack.c.b16 %v1152, %v1151
    %v1212 = vpack.c.b16 %v1154, %v1153
    %v1213 = vpack.c.b16 %v1156, %v1155
    %v1214 = vpack.c.b16 %v1158, %v1157
    %1271 = vmatpush.bf16.msra.mxu0 %v1166
    %1272 = vmatpush.bf16.msra.mxu0 %v1165
    %1273 = vmatpush.bf16.msra.mxu0 %v1164
    %1274 = vmatpush.bf16.msra.mxu0 %v1163
    %1275 = vmatpush.bf16.msra.mxu0 %v1162
    %1276 = vmatpush.bf16.msra.mxu0 %v1161
    %1277 = vmatpush.bf16.msra.mxu0 %v1160
    %1278 = vmatpush.bf16.msra.mxu0 %v1159
    %1279 = vmatmul.bf16.gmra.mxu0 %v197
    %v1280 = vpop.f32.mrf.mxu0
    %v1281 = vadd.f32 %v932, %v1280
    %v1282 = vpop.f32.mrf.mxu0
    %1283 = vdwg.mxu0
    %1284 = vmatpush.bf16.msra.mxu0 %v1174
    %1285 = vmatpush.bf16.msra.mxu0 %v1173
    %1286 = vmatpush.bf16.msra.mxu0 %v1172
    %1287 = vmatpush.bf16.msra.mxu0 %v1171
    %1288 = vmatpush.bf16.msra.mxu0 %v1170
    %1289 = vmatpush.bf16.msra.mxu0 %v1169
    %1290 = vmatpush.bf16.msra.mxu0 %v1168
    %1291 = vmatpush.bf16.msra.mxu0 %v1167
    %1292 = vmatmul.bf16.gmra.mxu0 %v198
    %v1293 = vpop.f32.mrf.mxu0
    %v1294 = vadd.f32 %v1281, %v1293
    %v1295 = vpop.f32.mrf.mxu0
    %1296 = vdwg.mxu0
    %1297 = vmatpush.bf16.msra.mxu0 %v1182
    %1298 = vmatpush.bf16.msra.mxu0 %v1181
    %1299 = vmatpush.bf16.msra.mxu0 %v1180
    %1300 = vmatpush.bf16.msra.mxu0 %v1179
    %1301 = vmatpush.bf16.msra.mxu0 %v1178
    %1302 = vmatpush.bf16.msra.mxu0 %v1177
    %1303 = vmatpush.bf16.msra.mxu0 %v1176
    %1304 = vmatpush.bf16.msra.mxu0 %v1175
    %1305 = vmatmul.bf16.gmra.mxu0 %v199
    %v1306 = vpop.f32.mrf.mxu0
    %v1307 = vadd.f32 %v1294, %v1306
    %v1308 = vpop.f32.mrf.mxu0
    %1309 = vdwg.mxu0
    %1310 = vmatpush.bf16.msra.mxu0 %v1190
    %1311 = vmatpush.bf16.msra.mxu0 %v1189
    %1312 = vmatpush.bf16.msra.mxu0 %v1188
    %1313 = vmatpush.bf16.msra.mxu0 %v1187
    %1314 = vmatpush.bf16.msra.mxu0 %v1186
    %1315 = vmatpush.bf16.msra.mxu0 %v1185
    %1316 = vmatpush.bf16.msra.mxu0 %v1184
    %1317 = vmatpush.bf16.msra.mxu0 %v1183
    %1318 = vmatmul.bf16.gmra.mxu0 %v200
    %v1319 = vpop.f32.mrf.mxu0
    %v1320 = vadd.f32 %v1307, %v1319
    %v1321 = vpop.f32.mrf.mxu0
    %1322 = vdwg.mxu0
    %1323 = vmatpush.bf16.msra.mxu0 %v1198
    %1324 = vmatpush.bf16.msra.mxu0 %v1197
    %1325 = vmatpush.bf16.msra.mxu0 %v1196
    %1326 = vmatpush.bf16.msra.mxu0 %v1195
    %1327 = vmatpush.bf16.msra.mxu0 %v1194
    %1328 = vmatpush.bf16.msra.mxu0 %v1193
    %1329 = vmatpush.bf16.msra.mxu0 %v1192
    %1330 = vmatpush.bf16.msra.mxu0 %v1191
    %1331 = vmatmul.bf16.gmra.mxu0 %v201
    %v1332 = vpop.f32.mrf.mxu0
    %v1333 = vadd.f32 %v1320, %v1332
    %v1334 = vpop.f32.mrf.mxu0
    %1335 = vdwg.mxu0
    %1336 = vmatpush.bf16.msra.mxu0 %v1206
    %1337 = vmatpush.bf16.msra.mxu0 %v1205
    %1338 = vmatpush.bf16.msra.mxu0 %v1204
    %1339 = vmatpush.bf16.msra.mxu0 %v1203
    %1340 = vmatpush.bf16.msra.mxu0 %v1202
    %1341 = vmatpush.bf16.msra.mxu0 %v1201
    %1342 = vmatpush.bf16.msra.mxu0 %v1200
    %1343 = vmatpush.bf16.msra.mxu0 %v1199
    %1344 = vmatmul.bf16.gmra.mxu0 %v202
    %v1345 = vpop.f32.mrf.mxu0
    %v1346 = vadd.f32 %v1333, %v1345
    %v1347 = vpop.f32.mrf.mxu0
    %1348 = vdwg.mxu0
    %1349 = vmatpush.bf16.msra.mxu0 %v1214
    %1350 = vmatpush.bf16.msra.mxu0 %v1213
    %1351 = vmatpush.bf16.msra.mxu0 %v1212
    %1352 = vmatpush.bf16.msra.mxu0 %v1211
    %1353 = vmatpush.bf16.msra.mxu0 %v1210
    %1354 = vmatpush.bf16.msra.mxu0 %v1209
    %1355 = vmatpush.bf16.msra.mxu0 %v1208
    %1356 = vmatpush.bf16.msra.mxu0 %v1207
    %1357 = vmatmul.bf16.gmra.mxu0 %v203
    %v1358 = vpop.f32.mrf.mxu0
    %v1359 = vadd.f32 %v1346, %v1358
    %v1360 = vpop.f32.mrf.mxu0
    %1361 = vdwg.mxu0
    %s1362 = sld [smem:[#allocation2 + $0x100]]
    %v1363 = vstv %s1362
    %v1364 = vmul.f32 %v49, %v1363
    %v1365 = vmul.f32 %v50, %v1363
    %v1366 = vmul.f32 %v51, %v1363
    %v1367 = vmul.f32 %v52, %v1363
    %v1368 = vmul.f32 %v53, %v1363
    %v1369 = vmul.f32 %v54, %v1363
    %v1370 = vmul.f32 %v55, %v1363
    %s1371 = sld [smem:[#allocation2 + $0x101]]
    %v1372 = vstv %s1371
    %v1373 = vmul.f32 %v78, %v1372
    %v1374 = vmul.f32 %v77, %v1372
    %v1375 = vmul.f32 %v76, %v1372
    %v1376 = vmul.f32 %v75, %v1372
    %v1377 = vmul.f32 %v74, %v1372
    %v1378 = vmul.f32 %v73, %v1372
    %v1379 = vmul.f32 %v79, %v1372
    %v1380 = vadd.f32 %v1364, %v1373
    %v1381 = vadd.f32 %v1365, %v1374
    %v1382 = vadd.f32 %v1366, %v1375
    %v1383 = vadd.f32 %v1367, %v1376
    %v1384 = vadd.f32 %v1368, %v1377
    %v1385 = vadd.f32 %v1369, %v1378
    %v1386 = vadd.f32 %v1370, %v1379
    %s1387 = sld [smem:[#allocation2 + $0x102]]
    %v1388 = vstv %s1387
    %v1389 = vmul.f32 %v100, %v1388
    %v1390 = vmul.f32 %v99, %v1388
    %v1391 = vmul.f32 %v98, %v1388
    %v1392 = vmul.f32 %v97, %v1388
    %v1393 = vmul.f32 %v96, %v1388
    %v1394 = vmul.f32 %v95, %v1388
    %v1395 = vmul.f32 %v101, %v1388
    %v1396 = vadd.f32 %v1380, %v1389
    %v1397 = vadd.f32 %v1381, %v1390
    %v1398 = vadd.f32 %v1382, %v1391
    %v1399 = vadd.f32 %v1383, %v1392
    %v1400 = vadd.f32 %v1384, %v1393
    %v1401 = vadd.f32 %v1385, %v1394
    %v1402 = vadd.f32 %v1386, %v1395
    %s1403 = sld [smem:[#allocation2 + $0x103]]
    %v1404 = vstv %s1403
    %v1405 = vmul.f32 %v122, %v1404
    %v1406 = vmul.f32 %v121, %v1404
    %v1407 = vmul.f32 %v120, %v1404
    %v1408 = vmul.f32 %v119, %v1404
    %v1409 = vmul.f32 %v118, %v1404
    %v1410 = vmul.f32 %v117, %v1404
    %v1411 = vmul.f32 %v123, %v1404
    %v1412 = vadd.f32 %v1396, %v1405
    %v1413 = vadd.f32 %v1397, %v1406
    %v1414 = vadd.f32 %v1398, %v1407
    %v1415 = vadd.f32 %v1399, %v1408
    %v1416 = vadd.f32 %v1400, %v1409
    %v1417 = vadd.f32 %v1401, %v1410
    %v1418 = vadd.f32 %v1402, %v1411
    %s1419 = sld [smem:[#allocation4 + $0x2]]
    %v1420 = vstv %s1419
    %v1421 = vadd.f32 %v1412, %v1420
    %v1422 = vadd.f32 %v1413, %v1420
    %v1423 = vadd.f32 %v1414, %v1420
    %v1424 = vadd.f32 %v1415, %v1420
    %v1425 = vadd.f32 %v1416, %v1420
    %v1426 = vadd.f32 %v1417, %v1420
    %v1427 = vadd.f32 %v1418, %v1420
    %v1428 = vmax.f32 %v1421, 0.0
    %v1429 = vmax.f32 %v1422, 0.0
    %v1430 = vmax.f32 %v1423, 0.0
    %v1431 = vmax.f32 %v1424, 0.0
    %v1432 = vmax.f32 %v1425, 0.0
    %v1433 = vmax.f32 %v1426, 0.0
    %v1434 = vmax.f32 %v1427, 0.0
    %v1435 = vpack.c.bf16 %v1428, %v1428
    %v1436 = vpack.c.bf16 %v1429, %v1429
    %v1437 = vpack.c.bf16 %v1430, %v1430
    %v1438 = vpack.c.bf16 %v1431, %v1431
    %v1439 = vpack.c.bf16 %v1432, %v1432
    %v1440 = vpack.c.bf16 %v1433, %v1433
    %v1441 = vpack.c.bf16 %v1434, %v1434
    %v1442 = vld [vmem:[%s3 + $0x380] sm:$0xf]
    %v1443 = vld [vmem:[%s3 + $0x384] sm:$0xf]
    %v1444 = vld [vmem:[%s3 + $0x388] sm:$0xf]
    %v1445 = vld [vmem:[%s3 + $0x38c] sm:$0xf]
    %v1446 = vld [vmem:[%s3 + $0x390] sm:$0xf]
    %v1447 = vld [vmem:[%s3 + $0x394] sm:$0xf]
    %v1448 = vld [vmem:[%s3 + $0x398] sm:$0xf]
    %v1449 = vld [vmem:[%s3 + $0x39c] sm:$0xf]
    %v1450 = vld [vmem:[%s3 + $0x3a0] sm:$0xf]
    %v1451 = vld [vmem:[%s3 + $0x3a4] sm:$0xf]
    %v1452 = vld [vmem:[%s3 + $0x3a8] sm:$0xf]
    %v1453 = vld [vmem:[%s3 + $0x3ac] sm:$0xf]
    %v1454 = vld [vmem:[%s3 + $0x3b0] sm:$0xf]
    %v1455 = vld [vmem:[%s3 + $0x3b4] sm:$0xf]
    %v1456 = vld [vmem:[%s3 + $0x3b8] sm:$0xf]
    %v1457 = vld [vmem:[%s3 + $0x3bc] sm:$0xf]
    %v1458 = vld [vmem:[%s3 + $0x3c0] sm:$0xf]
    %v1459 = vld [vmem:[%s3 + $0x3c4] sm:$0xf]
    %v1460 = vld [vmem:[%s3 + $0x3c8] sm:$0xf]
    %v1461 = vld [vmem:[%s3 + $0x3cc] sm:$0xf]
    %v1462 = vld [vmem:[%s3 + $0x3d0] sm:$0xf]
    %v1463 = vld [vmem:[%s3 + $0x3d4] sm:$0xf]
    %v1464 = vld [vmem:[%s3 + $0x3d8] sm:$0xf]
    %v1465 = vld [vmem:[%s3 + $0x3dc] sm:$0xf]
    %v1466 = vld [vmem:[%s3 + $0x3e0] sm:$0xf]
    %v1467 = vld [vmem:[%s3 + $0x3e4] sm:$0xf]
    %v1468 = vld [vmem:[%s3 + $0x3e8] sm:$0xf]
    %v1469 = vld [vmem:[%s3 + $0x3ec] sm:$0xf]
    %v1470 = vld [vmem:[%s3 + $0x3f0] sm:$0xf]
    %v1471 = vld [vmem:[%s3 + $0x3f4] sm:$0xf]
    %v1472 = vld [vmem:[%s3 + $0x3f8] sm:$0xf]
    %v1473 = vld [vmem:[%s3 + $0x3fc] sm:$0xf]
    %v1474 = vld [vmem:[%s3 + $0x400] sm:$0xf]
    %v1475 = vld [vmem:[%s3 + $0x404] sm:$0xf]
    %v1476 = vld [vmem:[%s3 + $0x408] sm:$0xf]
    %v1477 = vld [vmem:[%s3 + $0x40c] sm:$0xf]
    %v1478 = vld [vmem:[%s3 + $0x410] sm:$0xf]
    %v1479 = vld [vmem:[%s3 + $0x414] sm:$0xf]
    %v1480 = vld [vmem:[%s3 + $0x418] sm:$0xf]
    %v1481 = vld [vmem:[%s3 + $0x41c] sm:$0xf]
    %v1482 = vld [vmem:[%s3 + $0x420] sm:$0xf]
    %v1483 = vld [vmem:[%s3 + $0x424] sm:$0xf]
    %v1484 = vld [vmem:[%s3 + $0x428] sm:$0xf]
    %v1485 = vld [vmem:[%s3 + $0x42c] sm:$0xf]
    %v1486 = vld [vmem:[%s3 + $0x430] sm:$0xf]
    %v1487 = vld [vmem:[%s3 + $0x434] sm:$0xf]
    %v1488 = vld [vmem:[%s3 + $0x438] sm:$0xf]
    %v1489 = vld [vmem:[%s3 + $0x43c] sm:$0xf]
    %v1490 = vld [vmem:[%s3 + $0x440] sm:$0xf]
    %v1491 = vld [vmem:[%s3 + $0x444] sm:$0xf]
    %v1492 = vld [vmem:[%s3 + $0x448] sm:$0xf]
    %v1493 = vld [vmem:[%s3 + $0x44c] sm:$0xf]
    %v1494 = vld [vmem:[%s3 + $0x450] sm:$0xf]
    %v1495 = vld [vmem:[%s3 + $0x454] sm:$0xf]
    %v1496 = vld [vmem:[%s3 + $0x458] sm:$0xf]
    %v1497 = vld [vmem:[%s3 + $0x45c] sm:$0xf]
    %v1498 = vld [vmem:[%s3 + $0x460] sm:$0xf]
    %v1499 = vld [vmem:[%s3 + $0x464] sm:$0xf]
    %v1500 = vld [vmem:[%s3 + $0x468] sm:$0xf]
    %v1501 = vld [vmem:[%s3 + $0x46c] sm:$0xf]
    %v1502 = vld [vmem:[%s3 + $0x470] sm:$0xf]
    %v1503 = vld [vmem:[%s3 + $0x474] sm:$0xf]
    %v1504 = vld [vmem:[%s3 + $0x478] sm:$0xf]
    %v1505 = vld [vmem:[%s3 + $0x47c] sm:$0xf]
    %v1506 = vld [vmem:[%s3 + $0x480] sm:$0xf]
    %v1507 = vld [vmem:[%s3 + $0x484] sm:$0xf]
    %v1508 = vld [vmem:[%s3 + $0x488] sm:$0xf]
    %v1509 = vld [vmem:[%s3 + $0x48c] sm:$0xf]
    %v1510 = vld [vmem:[%s3 + $0x490] sm:$0xf]
    %v1511 = vld [vmem:[%s3 + $0x494] sm:$0xf]
    %v1512 = vld [vmem:[%s3 + $0x498] sm:$0xf]
    %v1513 = vld [vmem:[%s3 + $0x49c] sm:$0xf]
    %v1514 = vld [vmem:[%s3 + $0x4a0] sm:$0xf]
    %v1515 = vld [vmem:[%s3 + $0x4a4] sm:$0xf]
    %v1516 = vld [vmem:[%s3 + $0x4a8] sm:$0xf]
    %v1517 = vld [vmem:[%s3 + $0x4ac] sm:$0xf]
    %v1518 = vld [vmem:[%s3 + $0x4b0] sm:$0xf]
    %v1519 = vld [vmem:[%s3 + $0x4b4] sm:$0xf]
    %v1520 = vld [vmem:[%s3 + $0x4b8] sm:$0xf]
    %v1521 = vld [vmem:[%s3 + $0x4bc] sm:$0xf]
    %v1522 = vld [vmem:[%s3 + $0x4c0] sm:$0xf]
    %v1523 = vld [vmem:[%s3 + $0x4c4] sm:$0xf]
    %v1524 = vld [vmem:[%s3 + $0x4c8] sm:$0xf]
    %v1525 = vld [vmem:[%s3 + $0x4cc] sm:$0xf]
    %v1526 = vld [vmem:[%s3 + $0x4d0] sm:$0xf]
    %v1527 = vld [vmem:[%s3 + $0x4d4] sm:$0xf]
    %v1528 = vld [vmem:[%s3 + $0x4d8] sm:$0xf]
    %v1529 = vld [vmem:[%s3 + $0x4dc] sm:$0xf]
    %v1530 = vld [vmem:[%s3 + $0x4e0] sm:$0xf]
    %v1531 = vld [vmem:[%s3 + $0x4e4] sm:$0xf]
    %v1532 = vld [vmem:[%s3 + $0x4e8] sm:$0xf]
    %v1533 = vld [vmem:[%s3 + $0x4ec] sm:$0xf]
    %v1534 = vld [vmem:[%s3 + $0x4f0] sm:$0xf]
    %v1535 = vld [vmem:[%s3 + $0x4f4] sm:$0xf]
    %v1536 = vld [vmem:[%s3 + $0x4f8] sm:$0xf]
    %v1537 = vld [vmem:[%s3 + $0x4fc] sm:$0xf]
    %v1538 = vld [vmem:[%s3 + $0x500] sm:$0xf]
    %v1539 = vld [vmem:[%s3 + $0x504] sm:$0xf]
    %v1540 = vld [vmem:[%s3 + $0x508] sm:$0xf]
    %v1541 = vld [vmem:[%s3 + $0x50c] sm:$0xf]
    %v1542 = vld [vmem:[%s3 + $0x510] sm:$0xf]
    %v1543 = vld [vmem:[%s3 + $0x514] sm:$0xf]
    %v1544 = vld [vmem:[%s3 + $0x518] sm:$0xf]
    %v1545 = vld [vmem:[%s3 + $0x51c] sm:$0xf]
    %v1546 = vld [vmem:[%s3 + $0x520] sm:$0xf]
    %v1547 = vld [vmem:[%s3 + $0x524] sm:$0xf]
    %v1548 = vld [vmem:[%s3 + $0x528] sm:$0xf]
    %v1549 = vld [vmem:[%s3 + $0x52c] sm:$0xf]
    %v1550 = vld [vmem:[%s3 + $0x530] sm:$0xf]
    %v1551 = vld [vmem:[%s3 + $0x534] sm:$0xf]
    %v1552 = vld [vmem:[%s3 + $0x538] sm:$0xf]
    %v1553 = vld [vmem:[%s3 + $0x53c] sm:$0xf]
    %v1666 = vunpack.c.l.b16 %v1442
    %v1667 = vunpack.c.l.b16 %v1443
    %v1668 = vunpack.c.l.b16 %v1444
    %v1669 = vunpack.c.l.b16 %v1445
    %v1670 = vunpack.c.l.b16 %v1446
    %v1671 = vunpack.c.l.b16 %v1447
    %v1672 = vunpack.c.l.b16 %v1448
    %v1673 = vunpack.c.l.b16 %v1449
    %v1674 = vunpack.c.l.b16 %v1450
    %v1675 = vunpack.c.l.b16 %v1451
    %v1676 = vunpack.c.l.b16 %v1452
    %v1677 = vunpack.c.l.b16 %v1453
    %v1678 = vunpack.c.l.b16 %v1454
    %v1679 = vunpack.c.l.b16 %v1455
    %v1680 = vunpack.c.l.b16 %v1456
    %v1681 = vunpack.c.l.b16 %v1457
    %v1682 = vunpack.c.l.b16 %v1458
    %v1683 = vunpack.c.l.b16 %v1459
    %v1684 = vunpack.c.l.b16 %v1460
    %v1685 = vunpack.c.l.b16 %v1461
    %v1686 = vunpack.c.l.b16 %v1462
    %v1687 = vunpack.c.l.b16 %v1463
    %v1688 = vunpack.c.l.b16 %v1464
    %v1689 = vunpack.c.l.b16 %v1465
    %v1690 = vunpack.c.l.b16 %v1466
    %v1691 = vunpack.c.l.b16 %v1467
    %v1692 = vunpack.c.l.b16 %v1468
    %v1693 = vunpack.c.l.b16 %v1469
    %v1694 = vunpack.c.l.b16 %v1470
    %v1695 = vunpack.c.l.b16 %v1471
    %v1696 = vunpack.c.l.b16 %v1472
    %v1697 = vunpack.c.l.b16 %v1473
    %v1698 = vunpack.c.l.b16 %v1474
    %v1699 = vunpack.c.l.b16 %v1475
    %v1700 = vunpack.c.l.b16 %v1476
    %v1701 = vunpack.c.l.b16 %v1477
    %v1702 = vunpack.c.l.b16 %v1478
    %v1703 = vunpack.c.l.b16 %v1479
    %v1704 = vunpack.c.l.b16 %v1480
    %v1705 = vunpack.c.l.b16 %v1481
    %v1706 = vunpack.c.l.b16 %v1482
    %v1707 = vunpack.c.l.b16 %v1483
    %v1708 = vunpack.c.l.b16 %v1484
    %v1709 = vunpack.c.l.b16 %v1485
    %v1710 = vunpack.c.l.b16 %v1486
    %v1711 = vunpack.c.l.b16 %v1487
    %v1712 = vunpack.c.l.b16 %v1488
    %v1713 = vunpack.c.l.b16 %v1489
    %v1714 = vunpack.c.l.b16 %v1490
    %v1715 = vunpack.c.l.b16 %v1491
    %v1716 = vunpack.c.l.b16 %v1492
    %v1717 = vunpack.c.l.b16 %v1493
    %v1718 = vunpack.c.l.b16 %v1494
    %v1719 = vunpack.c.l.b16 %v1495
    %v1720 = vunpack.c.l.b16 %v1496
    %v1721 = vunpack.c.l.b16 %v1497
    %v1722 = vunpack.c.l.b16 %v1498
    %v1723 = vunpack.c.l.b16 %v1499
    %v1724 = vunpack.c.l.b16 %v1500
    %v1725 = vunpack.c.l.b16 %v1501
    %v1726 = vunpack.c.l.b16 %v1502
    %v1727 = vunpack.c.l.b16 %v1503
    %v1728 = vunpack.c.l.b16 %v1504
    %v1729 = vunpack.c.l.b16 %v1505
    %v1730 = vunpack.c.l.b16 %v1506
    %v1731 = vunpack.c.l.b16 %v1507
    %v1732 = vunpack.c.l.b16 %v1508
    %v1733 = vunpack.c.l.b16 %v1509
    %v1734 = vunpack.c.l.b16 %v1510
    %v1735 = vunpack.c.l.b16 %v1511
    %v1736 = vunpack.c.l.b16 %v1512
    %v1737 = vunpack.c.l.b16 %v1513
    %v1738 = vunpack.c.l.b16 %v1514
    %v1739 = vunpack.c.l.b16 %v1515
    %v1740 = vunpack.c.l.b16 %v1516
    %v1741 = vunpack.c.l.b16 %v1517
    %v1742 = vunpack.c.l.b16 %v1518
    %v1743 = vunpack.c.l.b16 %v1519
    %v1744 = vunpack.c.l.b16 %v1520
    %v1745 = vunpack.c.l.b16 %v1521
    %v1746 = vunpack.c.l.b16 %v1522
    %v1747 = vunpack.c.l.b16 %v1523
    %v1748 = vunpack.c.l.b16 %v1524
    %v1749 = vunpack.c.l.b16 %v1525
    %v1750 = vunpack.c.l.b16 %v1526
    %v1751 = vunpack.c.l.b16 %v1527
    %v1752 = vunpack.c.l.b16 %v1528
    %v1753 = vunpack.c.l.b16 %v1529
    %v1754 = vunpack.c.l.b16 %v1530
    %v1755 = vunpack.c.l.b16 %v1531
    %v1756 = vunpack.c.l.b16 %v1532
    %v1757 = vunpack.c.l.b16 %v1533
    %v1758 = vunpack.c.l.b16 %v1534
    %v1759 = vunpack.c.l.b16 %v1535
    %v1760 = vunpack.c.l.b16 %v1536
    %v1761 = vunpack.c.l.b16 %v1537
    %v1762 = vunpack.c.l.b16 %v1538
    %v1763 = vunpack.c.l.b16 %v1539
    %v1764 = vunpack.c.l.b16 %v1540
    %v1765 = vunpack.c.l.b16 %v1541
    %v1766 = vunpack.c.l.b16 %v1542
    %v1767 = vunpack.c.l.b16 %v1543
    %v1768 = vunpack.c.l.b16 %v1544
    %v1769 = vunpack.c.l.b16 %v1545
    %v1770 = vunpack.c.l.b16 %v1546
    %v1771 = vunpack.c.l.b16 %v1547
    %v1772 = vunpack.c.l.b16 %v1548
    %v1773 = vunpack.c.l.b16 %v1549
    %v1774 = vunpack.c.l.b16 %v1550
    %v1775 = vunpack.c.l.b16 %v1551
    %v1776 = vunpack.c.l.b16 %v1552
    %v1777 = vunpack.c.l.b16 %v1553
    %v1778 = vpack.c.b16 %v1667, %v1666
    %v1779 = vpack.c.b16 %v1669, %v1668
    %v1780 = vpack.c.b16 %v1671, %v1670
    %v1781 = vpack.c.b16 %v1673, %v1672
    %v1782 = vpack.c.b16 %v1675, %v1674
    %v1783 = vpack.c.b16 %v1677, %v1676
    %v1784 = vpack.c.b16 %v1679, %v1678
    %v1785 = vpack.c.b16 %v1681, %v1680
    %v1786 = vpack.c.b16 %v1683, %v1682
    %v1787 = vpack.c.b16 %v1685, %v1684
    %v1788 = vpack.c.b16 %v1687, %v1686
    %v1789 = vpack.c.b16 %v1689, %v1688
    %v1790 = vpack.c.b16 %v1691, %v1690
    %v1791 = vpack.c.b16 %v1693, %v1692
    %v1792 = vpack.c.b16 %v1695, %v1694
    %v1793 = vpack.c.b16 %v1697, %v1696
    %v1794 = vpack.c.b16 %v1699, %v1698
    %v1795 = vpack.c.b16 %v1701, %v1700
    %v1796 = vpack.c.b16 %v1703, %v1702
    %v1797 = vpack.c.b16 %v1705, %v1704
    %v1798 = vpack.c.b16 %v1707, %v1706
    %v1799 = vpack.c.b16 %v1709, %v1708
    %v1800 = vpack.c.b16 %v1711, %v1710
    %v1801 = vpack.c.b16 %v1713, %v1712
    %v1802 = vpack.c.b16 %v1715, %v1714
    %v1803 = vpack.c.b16 %v1717, %v1716
    %v1804 = vpack.c.b16 %v1719, %v1718
    %v1805 = vpack.c.b16 %v1721, %v1720
    %v1806 = vpack.c.b16 %v1723, %v1722
    %v1807 = vpack.c.b16 %v1725, %v1724
    %v1808 = vpack.c.b16 %v1727, %v1726
    %v1809 = vpack.c.b16 %v1729, %v1728
    %v1810 = vpack.c.b16 %v1731, %v1730
    %v1811 = vpack.c.b16 %v1733, %v1732
    %v1812 = vpack.c.b16 %v1735, %v1734
    %v1813 = vpack.c.b16 %v1737, %v1736
    %v1814 = vpack.c.b16 %v1739, %v1738
    %v1815 = vpack.c.b16 %v1741, %v1740
    %v1816 = vpack.c.b16 %v1743, %v1742
    %v1817 = vpack.c.b16 %v1745, %v1744
    %v1818 = vpack.c.b16 %v1747, %v1746
    %v1819 = vpack.c.b16 %v1749, %v1748
    %v1820 = vpack.c.b16 %v1751, %v1750
    %v1821 = vpack.c.b16 %v1753, %v1752
    %v1822 = vpack.c.b16 %v1755, %v1754
    %v1823 = vpack.c.b16 %v1757, %v1756
    %v1824 = vpack.c.b16 %v1759, %v1758
    %v1825 = vpack.c.b16 %v1761, %v1760
    %v1826 = vpack.c.b16 %v1763, %v1762
    %v1827 = vpack.c.b16 %v1765, %v1764
    %v1828 = vpack.c.b16 %v1767, %v1766
    %v1829 = vpack.c.b16 %v1769, %v1768
    %v1830 = vpack.c.b16 %v1771, %v1770
    %v1831 = vpack.c.b16 %v1773, %v1772
    %v1832 = vpack.c.b16 %v1775, %v1774
    %v1833 = vpack.c.b16 %v1777, %v1776
    %1890 = vmatpush.bf16.msra.mxu0 %v1785
    %1891 = vmatpush.bf16.msra.mxu0 %v1784
    %1892 = vmatpush.bf16.msra.mxu0 %v1783
    %1893 = vmatpush.bf16.msra.mxu0 %v1782
    %1894 = vmatpush.bf16.msra.mxu0 %v1781
    %1895 = vmatpush.bf16.msra.mxu0 %v1780
    %1896 = vmatpush.bf16.msra.mxu0 %v1779
    %1897 = vmatpush.bf16.msra.mxu0 %v1778
    %1898 = vmatmul.bf16.gmra.mxu0 %v1435
    %v1899 = vpop.f32.mrf.mxu0
    %v1900 = vadd.f32 0.0, %v1899
    %v1901 = vpop.f32.mrf.mxu0
    %1902 = vdwg.mxu0
    %1903 = vmatpush.bf16.msra.mxu0 %v1793
    %1904 = vmatpush.bf16.msra.mxu0 %v1792
    %1905 = vmatpush.bf16.msra.mxu0 %v1791
    %1906 = vmatpush.bf16.msra.mxu0 %v1790
    %1907 = vmatpush.bf16.msra.mxu0 %v1789
    %1908 = vmatpush.bf16.msra.mxu0 %v1788
    %1909 = vmatpush.bf16.msra.mxu0 %v1787
    %1910 = vmatpush.bf16.msra.mxu0 %v1786
    %1911 = vmatmul.bf16.gmra.mxu0 %v1436
    %v1912 = vpop.f32.mrf.mxu0
    %v1913 = vadd.f32 %v1900, %v1912
    %v1914 = vpop.f32.mrf.mxu0
    %1915 = vdwg.mxu0
    %1916 = vmatpush.bf16.msra.mxu0 %v1801
    %1917 = vmatpush.bf16.msra.mxu0 %v1800
    %1918 = vmatpush.bf16.msra.mxu0 %v1799
    %1919 = vmatpush.bf16.msra.mxu0 %v1798
    %1920 = vmatpush.bf16.msra.mxu0 %v1797
    %1921 = vmatpush.bf16.msra.mxu0 %v1796
    %1922 = vmatpush.bf16.msra.mxu0 %v1795
    %1923 = vmatpush.bf16.msra.mxu0 %v1794
    %1924 = vmatmul.bf16.gmra.mxu0 %v1437
    %v1925 = vpop.f32.mrf.mxu0
    %v1926 = vadd.f32 %v1913, %v1925
    %v1927 = vpop.f32.mrf.mxu0
    %1928 = vdwg.mxu0
    %1929 = vmatpush.bf16.msra.mxu0 %v1809
    %1930 = vmatpush.bf16.msra.mxu0 %v1808
    %1931 = vmatpush.bf16.msra.mxu0 %v1807
    %1932 = vmatpush.bf16.msra.mxu0 %v1806
    %1933 = vmatpush.bf16.msra.mxu0 %v1805
    %1934 = vmatpush.bf16.msra.mxu0 %v1804
    %1935 = vmatpush.bf16.msra.mxu0 %v1803
    %1936 = vmatpush.bf16.msra.mxu0 %v1802
    %1937 = vmatmul.bf16.gmra.mxu0 %v1438
    %v1938 = vpop.f32.mrf.mxu0
    %v1939 = vadd.f32 %v1926, %v1938
    %v1940 = vpop.f32.mrf.mxu0
    %1941 = vdwg.mxu0
    %1942 = vmatpush.bf16.msra.mxu0 %v1817
    %1943 = vmatpush.bf16.msra.mxu0 %v1816
    %1944 = vmatpush.bf16.msra.mxu0 %v1815
    %1945 = vmatpush.bf16.msra.mxu0 %v1814
    %1946 = vmatpush.bf16.msra.mxu0 %v1813
    %1947 = vmatpush.bf16.msra.mxu0 %v1812
    %1948 = vmatpush.bf16.msra.mxu0 %v1811
    %1949 = vmatpush.bf16.msra.mxu0 %v1810
    %1950 = vmatmul.bf16.gmra.mxu0 %v1439
    %v1951 = vpop.f32.mrf.mxu0
    %v1952 = vadd.f32 %v1939, %v1951
    %v1953 = vpop.f32.mrf.mxu0
    %1954 = vdwg.mxu0
    %1955 = vmatpush.bf16.msra.mxu0 %v1825
    %1956 = vmatpush.bf16.msra.mxu0 %v1824
    %1957 = vmatpush.bf16.msra.mxu0 %v1823
    %1958 = vmatpush.bf16.msra.mxu0 %v1822
    %1959 = vmatpush.bf16.msra.mxu0 %v1821
    %1960 = vmatpush.bf16.msra.mxu0 %v1820
    %1961 = vmatpush.bf16.msra.mxu0 %v1819
    %1962 = vmatpush.bf16.msra.mxu0 %v1818
    %1963 = vmatmul.bf16.gmra.mxu0 %v1440
    %v1964 = vpop.f32.mrf.mxu0
    %v1965 = vadd.f32 %v1952, %v1964
    %v1966 = vpop.f32.mrf.mxu0
    %1967 = vdwg.mxu0
    %1968 = vmatpush.bf16.msra.mxu0 %v1833
    %1969 = vmatpush.bf16.msra.mxu0 %v1832
    %1970 = vmatpush.bf16.msra.mxu0 %v1831
    %1971 = vmatpush.bf16.msra.mxu0 %v1830
    %1972 = vmatpush.bf16.msra.mxu0 %v1829
    %1973 = vmatpush.bf16.msra.mxu0 %v1828
    %1974 = vmatpush.bf16.msra.mxu0 %v1827
    %1975 = vmatpush.bf16.msra.mxu0 %v1826
    %1976 = vmatmul.bf16.gmra.mxu0 %v1441
    %v1977 = vpop.f32.mrf.mxu0
    %v1978 = vadd.f32 %v1965, %v1977
    %v1979 = vpop.f32.mrf.mxu0
    %1980 = vdwg.mxu0
    %v1981 = vadd.f32 %v1359, %v1978
    %s1982 = sld [smem:[#allocation2 + $0x180]]
    %v1983 = vstv %s1982
    %v1984 = vmul.f32 %v49, %v1983
    %v1985 = vmul.f32 %v50, %v1983
    %v1986 = vmul.f32 %v51, %v1983
    %v1987 = vmul.f32 %v52, %v1983
    %v1988 = vmul.f32 %v53, %v1983
    %v1989 = vmul.f32 %v54, %v1983
    %v1990 = vmul.f32 %v55, %v1983
    %s1991 = sld [smem:[#allocation2 + $0x181]]
    %v1992 = vstv %s1991
    %v1993 = vmul.f32 %v78, %v1992
    %v1994 = vmul.f32 %v77, %v1992
    %v1995 = vmul.f32 %v76, %v1992
    %v1996 = vmul.f32 %v75, %v1992
    %v1997 = vmul.f32 %v74, %v1992
    %v1998 = vmul.f32 %v73, %v1992
    %v1999 = vmul.f32 %v79, %v1992
    %v2000 = vadd.f32 %v1984, %v1993
    %v2001 = vadd.f32 %v1985, %v1994
    %v2002 = vadd.f32 %v1986, %v1995
    %v2003 = vadd.f32 %v1987, %v1996
    %v2004 = vadd.f32 %v1988, %v1997
    %v2005 = vadd.f32 %v1989, %v1998
    %v2006 = vadd.f32 %v1990, %v1999
    %s2007 = sld [smem:[#allocation2 + $0x182]]
    %v2008 = vstv %s2007
    %v2009 = vmul.f32 %v100, %v2008
    %v2010 = vmul.f32 %v99, %v2008
    %v2011 = vmul.f32 %v98, %v2008
    %v2012 = vmul.f32 %v97, %v2008
    %v2013 = vmul.f32 %v96, %v2008
    %v2014 = vmul.f32 %v95, %v2008
    %v2015 = vmul.f32 %v101, %v2008
    %v2016 = vadd.f32 %v2000, %v2009
    %v2017 = vadd.f32 %v2001, %v2010
    %v2018 = vadd.f32 %v2002, %v2011
    %v2019 = vadd.f32 %v2003, %v2012
    %v2020 = vadd.f32 %v2004, %v2013
    %v2021 = vadd.f32 %v2005, %v2014
    %v2022 = vadd.f32 %v2006, %v2015
    %s2023 = sld [smem:[#allocation2 + $0x183]]
    %v2024 = vstv %s2023
    %v2025 = vmul.f32 %v122, %v2024
    %v2026 = vmul.f32 %v121, %v2024
    %v2027 = vmul.f32 %v120, %v2024
    %v2028 = vmul.f32 %v119, %v2024
    %v2029 = vmul.f32 %v118, %v2024
    %v2030 = vmul.f32 %v117, %v2024
    %v2031 = vmul.f32 %v123, %v2024
    %v2032 = vadd.f32 %v2016, %v2025
    %v2033 = vadd.f32 %v2017, %v2026
    %v2034 = vadd.f32 %v2018, %v2027
    %v2035 = vadd.f32 %v2019, %v2028
    %v2036 = vadd.f32 %v2020, %v2029
    %v2037 = vadd.f32 %v2021, %v2030
    %v2038 = vadd.f32 %v2022, %v2031
    %s2039 = sld [smem:[#allocation4 + $0x3]]
    %v2040 = vstv %s2039
    %v2041 = vadd.f32 %v2032, %v2040
    %v2042 = vadd.f32 %v2033, %v2040
    %v2043 = vadd.f32 %v2034, %v2040
    %v2044 = vadd.f32 %v2035, %v2040
    %v2045 = vadd.f32 %v2036, %v2040
    %v2046 = vadd.f32 %v2037, %v2040
    %v2047 = vadd.f32 %v2038, %v2040
    %v2048 = vmax.f32 %v2041, 0.0
    %v2049 = vmax.f32 %v2042, 0.0
    %v2050 = vmax.f32 %v2043, 0.0
    %v2051 = vmax.f32 %v2044, 0.0
    %v2052 = vmax.f32 %v2045, 0.0
    %v2053 = vmax.f32 %v2046, 0.0
    %v2054 = vmax.f32 %v2047, 0.0
    %v2055 = vpack.c.bf16 %v2048, %v2048
    %v2056 = vpack.c.bf16 %v2049, %v2049
    %v2057 = vpack.c.bf16 %v2050, %v2050
    %v2058 = vpack.c.bf16 %v2051, %v2051
    %v2059 = vpack.c.bf16 %v2052, %v2052
    %v2060 = vpack.c.bf16 %v2053, %v2053
    %v2061 = vpack.c.bf16 %v2054, %v2054
    %v2062 = vld [vmem:[%s3 + $0x540] sm:$0xf]
    %v2063 = vld [vmem:[%s3 + $0x544] sm:$0xf]
    %v2064 = vld [vmem:[%s3 + $0x548] sm:$0xf]
    %v2065 = vld [vmem:[%s3 + $0x54c] sm:$0xf]
    %v2066 = vld [vmem:[%s3 + $0x550] sm:$0xf]
    %v2067 = vld [vmem:[%s3 + $0x554] sm:$0xf]
    %v2068 = vld [vmem:[%s3 + $0x558] sm:$0xf]
    %v2069 = vld [vmem:[%s3 + $0x55c] sm:$0xf]
    %v2070 = vld [vmem:[%s3 + $0x560] sm:$0xf]
    %v2071 = vld [vmem:[%s3 + $0x564] sm:$0xf]
    %v2072 = vld [vmem:[%s3 + $0x568] sm:$0xf]
    %v2073 = vld [vmem:[%s3 + $0x56c] sm:$0xf]
    %v2074 = vld [vmem:[%s3 + $0x570] sm:$0xf]
    %v2075 = vld [vmem:[%s3 + $0x574] sm:$0xf]
    %v2076 = vld [vmem:[%s3 + $0x578] sm:$0xf]
    %v2077 = vld [vmem:[%s3 + $0x57c] sm:$0xf]
    %v2078 = vld [vmem:[%s3 + $0x580] sm:$0xf]
    %v2079 = vld [vmem:[%s3 + $0x584] sm:$0xf]
    %v2080 = vld [vmem:[%s3 + $0x588] sm:$0xf]
    %v2081 = vld [vmem:[%s3 + $0x58c] sm:$0xf]
    %v2082 = vld [vmem:[%s3 + $0x590] sm:$0xf]
    %v2083 = vld [vmem:[%s3 + $0x594] sm:$0xf]
    %v2084 = vld [vmem:[%s3 + $0x598] sm:$0xf]
    %v2085 = vld [vmem:[%s3 + $0x59c] sm:$0xf]
    %v2086 = vld [vmem:[%s3 + $0x5a0] sm:$0xf]
    %v2087 = vld [vmem:[%s3 + $0x5a4] sm:$0xf]
    %v2088 = vld [vmem:[%s3 + $0x5a8] sm:$0xf]
    %v2089 = vld [vmem:[%s3 + $0x5ac] sm:$0xf]
    %v2090 = vld [vmem:[%s3 + $0x5b0] sm:$0xf]
    %v2091 = vld [vmem:[%s3 + $0x5b4] sm:$0xf]
    %v2092 = vld [vmem:[%s3 + $0x5b8] sm:$0xf]
    %v2093 = vld [vmem:[%s3 + $0x5bc] sm:$0xf]
    %v2094 = vld [vmem:[%s3 + $0x5c0] sm:$0xf]
    %v2095 = vld [vmem:[%s3 + $0x5c4] sm:$0xf]
    %v2096 = vld [vmem:[%s3 + $0x5c8] sm:$0xf]
    %v2097 = vld [vmem:[%s3 + $0x5cc] sm:$0xf]
    %v2098 = vld [vmem:[%s3 + $0x5d0] sm:$0xf]
    %v2099 = vld [vmem:[%s3 + $0x5d4] sm:$0xf]
    %v2100 = vld [vmem:[%s3 + $0x5d8] sm:$0xf]
    %v2101 = vld [vmem:[%s3 + $0x5dc] sm:$0xf]
    %v2102 = vld [vmem:[%s3 + $0x5e0] sm:$0xf]
    %v2103 = vld [vmem:[%s3 + $0x5e4] sm:$0xf]
    %v2104 = vld [vmem:[%s3 + $0x5e8] sm:$0xf]
    %v2105 = vld [vmem:[%s3 + $0x5ec] sm:$0xf]
    %v2106 = vld [vmem:[%s3 + $0x5f0] sm:$0xf]
    %v2107 = vld [vmem:[%s3 + $0x5f4] sm:$0xf]
    %v2108 = vld [vmem:[%s3 + $0x5f8] sm:$0xf]
    %v2109 = vld [vmem:[%s3 + $0x5fc] sm:$0xf]
    %v2110 = vld [vmem:[%s3 + $0x600] sm:$0xf]
    %v2111 = vld [vmem:[%s3 + $0x604] sm:$0xf]
    %v2112 = vld [vmem:[%s3 + $0x608] sm:$0xf]
    %v2113 = vld [vmem:[%s3 + $0x60c] sm:$0xf]
    %v2114 = vld [vmem:[%s3 + $0x610] sm:$0xf]
    %v2115 = vld [vmem:[%s3 + $0x614] sm:$0xf]
    %v2116 = vld [vmem:[%s3 + $0x618] sm:$0xf]
    %v2117 = vld [vmem:[%s3 + $0x61c] sm:$0xf]
    %v2118 = vld [vmem:[%s3 + $0x620] sm:$0xf]
    %v2119 = vld [vmem:[%s3 + $0x624] sm:$0xf]
    %v2120 = vld [vmem:[%s3 + $0x628] sm:$0xf]
    %v2121 = vld [vmem:[%s3 + $0x62c] sm:$0xf]
    %v2122 = vld [vmem:[%s3 + $0x630] sm:$0xf]
    %v2123 = vld [vmem:[%s3 + $0x634] sm:$0xf]
    %v2124 = vld [vmem:[%s3 + $0x638] sm:$0xf]
    %v2125 = vld [vmem:[%s3 + $0x63c] sm:$0xf]
    %v2126 = vld [vmem:[%s3 + $0x640] sm:$0xf]
    %v2127 = vld [vmem:[%s3 + $0x644] sm:$0xf]
    %v2128 = vld [vmem:[%s3 + $0x648] sm:$0xf]
    %v2129 = vld [vmem:[%s3 + $0x64c] sm:$0xf]
    %v2130 = vld [vmem:[%s3 + $0x650] sm:$0xf]
    %v2131 = vld [vmem:[%s3 + $0x654] sm:$0xf]
    %v2132 = vld [vmem:[%s3 + $0x658] sm:$0xf]
    %v2133 = vld [vmem:[%s3 + $0x65c] sm:$0xf]
    %v2134 = vld [vmem:[%s3 + $0x660] sm:$0xf]
    %v2135 = vld [vmem:[%s3 + $0x664] sm:$0xf]
    %v2136 = vld [vmem:[%s3 + $0x668] sm:$0xf]
    %v2137 = vld [vmem:[%s3 + $0x66c] sm:$0xf]
    %v2138 = vld [vmem:[%s3 + $0x670] sm:$0xf]
    %v2139 = vld [vmem:[%s3 + $0x674] sm:$0xf]
    %v2140 = vld [vmem:[%s3 + $0x678] sm:$0xf]
    %v2141 = vld [vmem:[%s3 + $0x67c] sm:$0xf]
    %v2142 = vld [vmem:[%s3 + $0x680] sm:$0xf]
    %v2143 = vld [vmem:[%s3 + $0x684] sm:$0xf]
    %v2144 = vld [vmem:[%s3 + $0x688] sm:$0xf]
    %v2145 = vld [vmem:[%s3 + $0x68c] sm:$0xf]
    %v2146 = vld [vmem:[%s3 + $0x690] sm:$0xf]
    %v2147 = vld [vmem:[%s3 + $0x694] sm:$0xf]
    %v2148 = vld [vmem:[%s3 + $0x698] sm:$0xf]
    %v2149 = vld [vmem:[%s3 + $0x69c] sm:$0xf]
    %v2150 = vld [vmem:[%s3 + $0x6a0] sm:$0xf]
    %v2151 = vld [vmem:[%s3 + $0x6a4] sm:$0xf]
    %v2152 = vld [vmem:[%s3 + $0x6a8] sm:$0xf]
    %v2153 = vld [vmem:[%s3 + $0x6ac] sm:$0xf]
    %v2154 = vld [vmem:[%s3 + $0x6b0] sm:$0xf]
    %v2155 = vld [vmem:[%s3 + $0x6b4] sm:$0xf]
    %v2156 = vld [vmem:[%s3 + $0x6b8] sm:$0xf]
    %v2157 = vld [vmem:[%s3 + $0x6bc] sm:$0xf]
    %v2158 = vld [vmem:[%s3 + $0x6c0] sm:$0xf]
    %v2159 = vld [vmem:[%s3 + $0x6c4] sm:$0xf]
    %v2160 = vld [vmem:[%s3 + $0x6c8] sm:$0xf]
    %v2161 = vld [vmem:[%s3 + $0x6cc] sm:$0xf]
    %v2162 = vld [vmem:[%s3 + $0x6d0] sm:$0xf]
    %v2163 = vld [vmem:[%s3 + $0x6d4] sm:$0xf]
    %v2164 = vld [vmem:[%s3 + $0x6d8] sm:$0xf]
    %v2165 = vld [vmem:[%s3 + $0x6dc] sm:$0xf]
    %v2166 = vld [vmem:[%s3 + $0x6e0] sm:$0xf]
    %v2167 = vld [vmem:[%s3 + $0x6e4] sm:$0xf]
    %v2168 = vld [vmem:[%s3 + $0x6e8] sm:$0xf]
    %v2169 = vld [vmem:[%s3 + $0x6ec] sm:$0xf]
    %v2170 = vld [vmem:[%s3 + $0x6f0] sm:$0xf]
    %v2171 = vld [vmem:[%s3 + $0x6f4] sm:$0xf]
    %v2172 = vld [vmem:[%s3 + $0x6f8] sm:$0xf]
    %v2173 = vld [vmem:[%s3 + $0x6fc] sm:$0xf]
    %v2286 = vunpack.c.l.b16 %v2062
    %v2287 = vunpack.c.l.b16 %v2063
    %v2288 = vunpack.c.l.b16 %v2064
    %v2289 = vunpack.c.l.b16 %v2065
    %v2290 = vunpack.c.l.b16 %v2066
    %v2291 = vunpack.c.l.b16 %v2067
    %v2292 = vunpack.c.l.b16 %v2068
    %v2293 = vunpack.c.l.b16 %v2069
    %v2294 = vunpack.c.l.b16 %v2070
    %v2295 = vunpack.c.l.b16 %v2071
    %v2296 = vunpack.c.l.b16 %v2072
    %v2297 = vunpack.c.l.b16 %v2073
    %v2298 = vunpack.c.l.b16 %v2074
    %v2299 = vunpack.c.l.b16 %v2075
    %v2300 = vunpack.c.l.b16 %v2076
    %v2301 = vunpack.c.l.b16 %v2077
    %v2302 = vunpack.c.l.b16 %v2078
    %v2303 = vunpack.c.l.b16 %v2079
    %v2304 = vunpack.c.l.b16 %v2080
    %v2305 = vunpack.c.l.b16 %v2081
    %v2306 = vunpack.c.l.b16 %v2082
    %v2307 = vunpack.c.l.b16 %v2083
    %v2308 = vunpack.c.l.b16 %v2084
    %v2309 = vunpack.c.l.b16 %v2085
    %v2310 = vunpack.c.l.b16 %v2086
    %v2311 = vunpack.c.l.b16 %v2087
    %v2312 = vunpack.c.l.b16 %v2088
    %v2313 = vunpack.c.l.b16 %v2089
    %v2314 = vunpack.c.l.b16 %v2090
    %v2315 = vunpack.c.l.b16 %v2091
    %v2316 = vunpack.c.l.b16 %v2092
    %v2317 = vunpack.c.l.b16 %v2093
    %v2318 = vunpack.c.l.b16 %v2094
    %v2319 = vunpack.c.l.b16 %v2095
    %v2320 = vunpack.c.l.b16 %v2096
    %v2321 = vunpack.c.l.b16 %v2097
    %v2322 = vunpack.c.l.b16 %v2098
    %v2323 = vunpack.c.l.b16 %v2099
    %v2324 = vunpack.c.l.b16 %v2100
    %v2325 = vunpack.c.l.b16 %v2101
    %v2326 = vunpack.c.l.b16 %v2102
    %v2327 = vunpack.c.l.b16 %v2103
    %v2328 = vunpack.c.l.b16 %v2104
    %v2329 = vunpack.c.l.b16 %v2105
    %v2330 = vunpack.c.l.b16 %v2106
    %v2331 = vunpack.c.l.b16 %v2107
    %v2332 = vunpack.c.l.b16 %v2108
    %v2333 = vunpack.c.l.b16 %v2109
    %v2334 = vunpack.c.l.b16 %v2110
    %v2335 = vunpack.c.l.b16 %v2111
    %v2336 = vunpack.c.l.b16 %v2112
    %v2337 = vunpack.c.l.b16 %v2113
    %v2338 = vunpack.c.l.b16 %v2114
    %v2339 = vunpack.c.l.b16 %v2115
    %v2340 = vunpack.c.l.b16 %v2116
    %v2341 = vunpack.c.l.b16 %v2117
    %v2342 = vunpack.c.l.b16 %v2118
    %v2343 = vunpack.c.l.b16 %v2119
    %v2344 = vunpack.c.l.b16 %v2120
    %v2345 = vunpack.c.l.b16 %v2121
    %v2346 = vunpack.c.l.b16 %v2122
    %v2347 = vunpack.c.l.b16 %v2123
    %v2348 = vunpack.c.l.b16 %v2124
    %v2349 = vunpack.c.l.b16 %v2125
    %v2350 = vunpack.c.l.b16 %v2126
    %v2351 = vunpack.c.l.b16 %v2127
    %v2352 = vunpack.c.l.b16 %v2128
    %v2353 = vunpack.c.l.b16 %v2129
    %v2354 = vunpack.c.l.b16 %v2130
    %v2355 = vunpack.c.l.b16 %v2131
    %v2356 = vunpack.c.l.b16 %v2132
    %v2357 = vunpack.c.l.b16 %v2133
    %v2358 = vunpack.c.l.b16 %v2134
    %v2359 = vunpack.c.l.b16 %v2135
    %v2360 = vunpack.c.l.b16 %v2136
    %v2361 = vunpack.c.l.b16 %v2137
    %v2362 = vunpack.c.l.b16 %v2138
    %v2363 = vunpack.c.l.b16 %v2139
    %v2364 = vunpack.c.l.b16 %v2140
    %v2365 = vunpack.c.l.b16 %v2141
    %v2366 = vunpack.c.l.b16 %v2142
    %v2367 = vunpack.c.l.b16 %v2143
    %v2368 = vunpack.c.l.b16 %v2144
    %v2369 = vunpack.c.l.b16 %v2145
    %v2370 = vunpack.c.l.b16 %v2146
    %v2371 = vunpack.c.l.b16 %v2147
    %v2372 = vunpack.c.l.b16 %v2148
    %v2373 = vunpack.c.l.b16 %v2149
    %v2374 = vunpack.c.l.b16 %v2150
    %v2375 = vunpack.c.l.b16 %v2151
    %v2376 = vunpack.c.l.b16 %v2152
    %v2377 = vunpack.c.l.b16 %v2153
    %v2378 = vunpack.c.l.b16 %v2154
    %v2379 = vunpack.c.l.b16 %v2155
    %v2380 = vunpack.c.l.b16 %v2156
    %v2381 = vunpack.c.l.b16 %v2157
    %v2382 = vunpack.c.l.b16 %v2158
    %v2383 = vunpack.c.l.b16 %v2159
    %v2384 = vunpack.c.l.b16 %v2160
    %v2385 = vunpack.c.l.b16 %v2161
    %v2386 = vunpack.c.l.b16 %v2162
    %v2387 = vunpack.c.l.b16 %v2163
    %v2388 = vunpack.c.l.b16 %v2164
    %v2389 = vunpack.c.l.b16 %v2165
    %v2390 = vunpack.c.l.b16 %v2166
    %v2391 = vunpack.c.l.b16 %v2167
    %v2392 = vunpack.c.l.b16 %v2168
    %v2393 = vunpack.c.l.b16 %v2169
    %v2394 = vunpack.c.l.b16 %v2170
    %v2395 = vunpack.c.l.b16 %v2171
    %v2396 = vunpack.c.l.b16 %v2172
    %v2397 = vunpack.c.l.b16 %v2173
    %v2398 = vpack.c.b16 %v2287, %v2286
    %v2399 = vpack.c.b16 %v2289, %v2288
    %v2400 = vpack.c.b16 %v2291, %v2290
    %v2401 = vpack.c.b16 %v2293, %v2292
    %v2402 = vpack.c.b16 %v2295, %v2294
    %v2403 = vpack.c.b16 %v2297, %v2296
    %v2404 = vpack.c.b16 %v2299, %v2298
    %v2405 = vpack.c.b16 %v2301, %v2300
    %v2406 = vpack.c.b16 %v2303, %v2302
    %v2407 = vpack.c.b16 %v2305, %v2304
    %v2408 = vpack.c.b16 %v2307, %v2306
    %v2409 = vpack.c.b16 %v2309, %v2308
    %v2410 = vpack.c.b16 %v2311, %v2310
    %v2411 = vpack.c.b16 %v2313, %v2312
    %v2412 = vpack.c.b16 %v2315, %v2314
    %v2413 = vpack.c.b16 %v2317, %v2316
    %v2414 = vpack.c.b16 %v2319, %v2318
    %v2415 = vpack.c.b16 %v2321, %v2320
    %v2416 = vpack.c.b16 %v2323, %v2322
    %v2417 = vpack.c.b16 %v2325, %v2324
    %v2418 = vpack.c.b16 %v2327, %v2326
    %v2419 = vpack.c.b16 %v2329, %v2328
    %v2420 = vpack.c.b16 %v2331, %v2330
    %v2421 = vpack.c.b16 %v2333, %v2332
    %v2422 = vpack.c.b16 %v2335, %v2334
    %v2423 = vpack.c.b16 %v2337, %v2336
    %v2424 = vpack.c.b16 %v2339, %v2338
    %v2425 = vpack.c.b16 %v2341, %v2340
    %v2426 = vpack.c.b16 %v2343, %v2342
    %v2427 = vpack.c.b16 %v2345, %v2344
    %v2428 = vpack.c.b16 %v2347, %v2346
    %v2429 = vpack.c.b16 %v2349, %v2348
    %v2430 = vpack.c.b16 %v2351, %v2350
    %v2431 = vpack.c.b16 %v2353, %v2352
    %v2432 = vpack.c.b16 %v2355, %v2354
    %v2433 = vpack.c.b16 %v2357, %v2356
    %v2434 = vpack.c.b16 %v2359, %v2358
    %v2435 = vpack.c.b16 %v2361, %v2360
    %v2436 = vpack.c.b16 %v2363, %v2362
    %v2437 = vpack.c.b16 %v2365, %v2364
    %v2438 = vpack.c.b16 %v2367, %v2366
    %v2439 = vpack.c.b16 %v2369, %v2368
    %v2440 = vpack.c.b16 %v2371, %v2370
    %v2441 = vpack.c.b16 %v2373, %v2372
    %v2442 = vpack.c.b16 %v2375, %v2374
    %v2443 = vpack.c.b16 %v2377, %v2376
    %v2444 = vpack.c.b16 %v2379, %v2378
    %v2445 = vpack.c.b16 %v2381, %v2380
    %v2446 = vpack.c.b16 %v2383, %v2382
    %v2447 = vpack.c.b16 %v2385, %v2384
    %v2448 = vpack.c.b16 %v2387, %v2386
    %v2449 = vpack.c.b16 %v2389, %v2388
    %v2450 = vpack.c.b16 %v2391, %v2390
    %v2451 = vpack.c.b16 %v2393, %v2392
    %v2452 = vpack.c.b16 %v2395, %v2394
    %v2453 = vpack.c.b16 %v2397, %v2396
    %2510 = vmatpush.bf16.msra.mxu0 %v2405
    %2511 = vmatpush.bf16.msra.mxu0 %v2404
    %2512 = vmatpush.bf16.msra.mxu0 %v2403
    %2513 = vmatpush.bf16.msra.mxu0 %v2402
    %2514 = vmatpush.bf16.msra.mxu0 %v2401
    %2515 = vmatpush.bf16.msra.mxu0 %v2400
    %2516 = vmatpush.bf16.msra.mxu0 %v2399
    %2517 = vmatpush.bf16.msra.mxu0 %v2398
    %2518 = vmatmul.bf16.gmra.mxu0 %v2055
    %v2519 = vpop.f32.mrf.mxu0
    %v2520 = vadd.f32 0.0, %v2519
    %v2521 = vpop.f32.mrf.mxu0
    %2522 = vdwg.mxu0
    %2523 = vmatpush.bf16.msra.mxu0 %v2413
    %2524 = vmatpush.bf16.msra.mxu0 %v2412
    %2525 = vmatpush.bf16.msra.mxu0 %v2411
    %2526 = vmatpush.bf16.msra.mxu0 %v2410
    %2527 = vmatpush.bf16.msra.mxu0 %v2409
    %2528 = vmatpush.bf16.msra.mxu0 %v2408
    %2529 = vmatpush.bf16.msra.mxu0 %v2407
    %2530 = vmatpush.bf16.msra.mxu0 %v2406
    %2531 = vmatmul.bf16.gmra.mxu0 %v2056
    %v2532 = vpop.f32.mrf.mxu0
    %v2533 = vadd.f32 %v2520, %v2532
    %v2534 = vpop.f32.mrf.mxu0
    %2535 = vdwg.mxu0
    %2536 = vmatpush.bf16.msra.mxu0 %v2421
    %2537 = vmatpush.bf16.msra.mxu0 %v2420
    %2538 = vmatpush.bf16.msra.mxu0 %v2419
    %2539 = vmatpush.bf16.msra.mxu0 %v2418
    %2540 = vmatpush.bf16.msra.mxu0 %v2417
    %2541 = vmatpush.bf16.msra.mxu0 %v2416
    %2542 = vmatpush.bf16.msra.mxu0 %v2415
    %2543 = vmatpush.bf16.msra.mxu0 %v2414
    %2544 = vmatmul.bf16.gmra.mxu0 %v2057
    %v2545 = vpop.f32.mrf.mxu0
    %v2546 = vadd.f32 %v2533, %v2545
    %v2547 = vpop.f32.mrf.mxu0
    %2548 = vdwg.mxu0
    %2549 = vmatpush.bf16.msra.mxu0 %v2429
    %2550 = vmatpush.bf16.msra.mxu0 %v2428
    %2551 = vmatpush.bf16.msra.mxu0 %v2427
    %2552 = vmatpush.bf16.msra.mxu0 %v2426
    %2553 = vmatpush.bf16.msra.mxu0 %v2425
    %2554 = vmatpush.bf16.msra.mxu0 %v2424
    %2555 = vmatpush.bf16.msra.mxu0 %v2423
    %2556 = vmatpush.bf16.msra.mxu0 %v2422
    %2557 = vmatmul.bf16.gmra.mxu0 %v2058
    %v2558 = vpop.f32.mrf.mxu0
    %v2559 = vadd.f32 %v2546, %v2558
    %v2560 = vpop.f32.mrf.mxu0
    %2561 = vdwg.mxu0
    %2562 = vmatpush.bf16.msra.mxu0 %v2437
    %2563 = vmatpush.bf16.msra.mxu0 %v2436
    %2564 = vmatpush.bf16.msra.mxu0 %v2435
    %2565 = vmatpush.bf16.msra.mxu0 %v2434
    %2566 = vmatpush.bf16.msra.mxu0 %v2433
    %2567 = vmatpush.bf16.msra.mxu0 %v2432
    %2568 = vmatpush.bf16.msra.mxu0 %v2431
    %2569 = vmatpush.bf16.msra.mxu0 %v2430
    %2570 = vmatmul.bf16.gmra.mxu0 %v2059
    %v2571 = vpop.f32.mrf.mxu0
    %v2572 = vadd.f32 %v2559, %v2571
    %v2573 = vpop.f32.mrf.mxu0
    %2574 = vdwg.mxu0
    %2575 = vmatpush.bf16.msra.mxu0 %v2445
    %2576 = vmatpush.bf16.msra.mxu0 %v2444
    %2577 = vmatpush.bf16.msra.mxu0 %v2443
    %2578 = vmatpush.bf16.msra.mxu0 %v2442
    %2579 = vmatpush.bf16.msra.mxu0 %v2441
    %2580 = vmatpush.bf16.msra.mxu0 %v2440
    %2581 = vmatpush.bf16.msra.mxu0 %v2439
    %2582 = vmatpush.bf16.msra.mxu0 %v2438
    %2583 = vmatmul.bf16.gmra.mxu0 %v2060
    %v2584 = vpop.f32.mrf.mxu0
    %v2585 = vadd.f32 %v2572, %v2584
    %v2586 = vpop.f32.mrf.mxu0
    %2587 = vdwg.mxu0
    %2588 = vmatpush.bf16.msra.mxu0 %v2453
    %2589 = vmatpush.bf16.msra.mxu0 %v2452
    %2590 = vmatpush.bf16.msra.mxu0 %v2451
    %2591 = vmatpush.bf16.msra.mxu0 %v2450
    %2592 = vmatpush.bf16.msra.mxu0 %v2449
    %2593 = vmatpush.bf16.msra.mxu0 %v2448
    %2594 = vmatpush.bf16.msra.mxu0 %v2447
    %2595 = vmatpush.bf16.msra.mxu0 %v2446
    %2596 = vmatmul.bf16.gmra.mxu0 %v2061
    %v2597 = vpop.f32.mrf.mxu0
    %v2598 = vadd.f32 %v2585, %v2597
    %v2599 = vpop.f32.mrf.mxu0
    %2600 = vdwg.mxu0
    %v2601 = vadd.f32 %v1981, %v2598
    %v2602 = vld [vmem:[%s4] sm:$0x1]
    %v2604 = vperm.slane %v2602, 0
    %v2606 = vadd.f32 %v2601, %v2604
    %2607 = vst [vmem:[%s5] sm:$0xff] %v2606
    // Predicated region
    $region30: #{conv1dnn_forward.1} parent=1 // pred_check
      _
    $region31: #{conv1dnn_forward.1} parent=1 // pred_check_branch
      %2609 = sbr.rel (0) target = $region33
    $region32: #{conv1dnn_forward.1} parent=1 // pred_region
      _
    $region33: #{conv1dnn_forward.1} parent=1 // pred_fallthru
      _
    // Predicated region
    $region34: #{conv1dnn_forward.1} parent=1 // pred_check
      _
    $region35: #{conv1dnn_forward.1} parent=1 // pred_check_branch
      %2611 = sbr.rel (0) target = $region37
    $region36: #{conv1dnn_forward.1} parent=1 // pred_region
      _
    $region37: #{conv1dnn_forward.1} parent=1 // pred_fallthru
      _
    %2612 = vsyncpa [#allocation3], 1
    %2613 = vsyncpa [#allocation5], 1

</llo_original>
